<compile_context>
chip_gen: v6e
topology: v6e:2x2x1
jax: 0.10.0
libtpu: 0.0.40
codegen_flags: <defaults>
</compile_context>

<pallas_src>
import jax
import jax.numpy as jnp
from jax import lax
from jax.experimental import pallas as pl
from jax.experimental.pallas import tpu as pltpu


# ------------------------------- helpers -------------------------------------

def _round_up(x, m):
    return (x + m - 1) // m * m


def _pick_blocks(Rp, Pp, H, W, itemsize, impl):
    """Row / lane block sizes.

    Targets ~2 MiB of (src + flow + out) per grid step before double
    buffering, keeps >=2 grid steps whenever possible (both v7x TensorCores
    get work), and respects the (8, 128) tiling constraint exactly (RB always
    divides Rp and is a multiple of 8; PB divides Pp and is a multiple of 128).
    """
    target = 2 << 20
    per_row = Pp * (2 * itemsize + 8)           # src + out + two f32 flow rows
    max_rb = Rp if Rp < 16 else Rp // 2         # prefer >= 2 row steps
    RB = 8
    r = 16
    while r <= max_rb:
        if Rp % r == 0 and r * per_row <= target:
            RB = r
        r += 8

    PB = Pp
    if impl == "separable":
        # Bound the (RB, H|W, PB) f32 interpolation temporaries to ~6 MiB.
        temp_budget = 6 << 20
        max_pb = max(128, temp_budget // (RB * 3 * max(H, W) * 4))
        cand = Pp
        while cand > 128 and (cand > max_pb or Pp % cand != 0):
            cand -= 128
        PB = cand
        # Guarantee >= 2 grid steps for the N*C <= 8 case (v7x dual core).
        if (Rp // RB) == 1 and PB == Pp and Pp >= 256:
            half = (Pp // 2) // 128 * 128
            while half >= 128 and Pp % half != 0:
                half -= 128
            if half >= 128:
                PB = half
    return RB, PB


# ---------------------- kernel 1: 4-tap lane gather ---------------------------

def _make_gather_kernel(H, W, RB, PB):
    inv_w = 1.0 / float(W)

    def kernel(src_ref, fy_ref, fx_ref, out_ref):
        # src_ref: (RB, Pp) full pixel axis;  fy/fx/out_ref: (RB, PB)
        lane0 = pl.program_id(1) * PB
        p_f = (lax.broadcasted_iota(jnp.int32, (RB, PB), 1) + lane0
               ).astype(jnp.float32)
        # row/col of each flattened pixel (exact for H*W < 2**23)
        row_f = jnp.floor((p_f + 0.5) * inv_w)
        col_f = p_f - row_f * float(W)

        y = jnp.clip(row_f + fy_ref[...], 0.0, float(H - 1))
        x = jnp.clip(col_f + fx_ref[...], 0.0, float(W - 1))
        y0 = jnp.floor(y)
        x0 = jnp.floor(x)
        wy = y - y0
        wx = x - x0
        x0i = x0.astype(jnp.int32)
        x1i = jnp.minimum(x0i + 1, W - 1)
        y0i = y0.astype(jnp.int32)
        r0 = y0i * W                                    # shared across x taps
        r1 = jnp.minimum(y0i + 1, H - 1) * W

        src = src_ref[...].astype(jnp.float32)          # (RB, Pp)

        def tap(idx):
            return jnp.take_along_axis(src, idx, axis=1,
                                       mode="promise_in_bounds")

        # Nested lerps: at most two gathered planes live at once.
        v00 = tap(r0 + x0i)
        v01 = tap(r0 + x1i)
        top = v00 + wx * (v01 - v00)
        v10 = tap(r1 + x0i)
        v11 = tap(r1 + x1i)
        bot = v10 + wx * (v11 - v10)
        out_ref[...] = (top + wy * (bot - top)).astype(out_ref.dtype)

    return kernel


# --------------- kernel 2: separable one-hot (MXU) fallback -------------------

def _make_separable_kernel(H, W, RB, PB):
    inv_w = 1.0 / float(W)

    def kernel(src_ref, fy_ref, fx_ref, out_ref):
        # src_ref: (RB, H, W);  fy/fx/out_ref: (RB, PB)
        lane0 = pl.program_id(1) * PB
        p_f = (lax.broadcasted_iota(jnp.int32, (RB, PB), 1) + lane0
               ).astype(jnp.float32)
        row_f = jnp.floor((p_f + 0.5) * inv_w)
        col_f = p_f - row_f * float(W)

        y = jnp.clip(row_f + fy_ref[...], 0.0, float(H - 1))
        x = jnp.clip(col_f + fx_ref[...], 0.0, float(W - 1))
        y0 = jnp.floor(y)
        x0 = jnp.floor(x)
        wy = y - y0
        wx = x - x0
        x0i = x0.astype(jnp.int32)
        x1i = jnp.minimum(x0i + 1, W - 1)
        y0i = y0.astype(jnp.int32)
        y1i = jnp.minimum(y0i + 1, H - 1)

        # Small one-hot interpolation matrices (O(P*(H+W)), not O(P^2)).
        i_iota = lax.broadcasted_iota(jnp.int32, (RB, W, PB), 1)
        wx_t = (jnp.where(i_iota == x0i[:, None, :], 1.0 - wx[:, None, :], 0.0)
                + jnp.where(i_iota == x1i[:, None, :], wx[:, None, :], 0.0))
        j_iota = lax.broadcasted_iota(jnp.int32, (RB, H, PB), 1)
        wy_t = (jnp.where(j_iota == y0i[:, None, :], 1.0 - wy[:, None, :], 0.0)
                + jnp.where(j_iota == y1i[:, None, :], wy[:, None, :], 0.0))

        src = src_ref[...].astype(jnp.float32)          # (RB, H, W)
        # Batched x-interp on the MXU: (RB,H,W) @ (RB,W,PB) -> (RB,H,PB)
        t = jnp.einsum("rhw,rwp->rhp", src, wx_t,
                       preferred_element_type=jnp.float32)
        out = jnp.sum(t * wy_t, axis=1)                 # (RB, PB)
        out_ref[...] = out.astype(out_ref.dtype)

    return kernel


# --------------------------------- wrapper ------------------------------------

def _spatial_transformer_impl(src, flow, impl):
    N, C, H, W = src.shape
    assert flow.shape == (N, 2, H, W)
    P = H * W
    assert P < (1 << 23), "f32 row/col derivation needs H*W < 2**23"
    Pp = _round_up(P, 128)            # lane-dense pixel axis
    R = N * C
    Rp = _round_up(R, 8)              # sublane-dense batch*channel axis
    itemsize = src.dtype.itemsize
    RB, PB = _pick_blocks(Rp, Pp, H, W, itemsize, impl)
    grid = (Rp // RB, Pp // PB)

    # Flow as two dense 2-D f32 arrays, replicated across channels so every
    # array shares the same (Rp, Pp) row structure (no per-batch structure in
    # the kernel).
    fy = jnp.repeat(flow[:, 0].reshape(N, P).astype(jnp.float32), C, axis=0)
    fx = jnp.repeat(flow[:, 1].reshape(N, P).astype(jnp.float32), C, axis=0)
    fy = jnp.pad(fy, ((0, Rp - R), (0, Pp - P)))
    fx = jnp.pad(fx, ((0, Rp - R), (0, Pp - P)))

    flow_spec = pl.BlockSpec((RB, PB), lambda i, j: (i, j))
    out_spec = pl.BlockSpec((RB, PB), lambda i, j: (i, j))
    out_shape = jax.ShapeDtypeStruct((Rp, Pp), src.dtype)
    cparams = pltpu.CompilerParams(
        dimension_semantics=("parallel", "parallel"),
        vmem_limit_bytes=32 * 1024 * 1024)
    cost = pl.CostEstimate(
        flops=int(15 * Rp * Pp),
        transcendentals=0,
        bytes_accessed=int(Rp * Pp * (2 * itemsize + 8)))

    if impl == "gather":
        src_l = jnp.pad(src.reshape(R, P), ((0, Rp - R), (0, Pp - P)))
        out = pl.pallas_call(
            _make_gather_kernel(H, W, RB, PB),
            out_shape=out_shape,
            grid=grid,
            in_specs=[pl.BlockSpec((RB, Pp), lambda i, j: (i, 0)),
                      flow_spec, flow_spec],
            out_specs=out_spec,
            compiler_params=cparams,
            cost_estimate=cost,
        )(src_l, fy, fx)
    elif impl == "separable":
        src_s = jnp.pad(src.reshape(R, H, W), ((0, Rp - R), (0, 0), (0, 0)))
        out = pl.pallas_call(
            _make_separable_kernel(H, W, RB, PB),
            out_shape=out_shape,
            grid=grid,
            in_specs=[pl.BlockSpec((RB, H, W), lambda i, j: (i, 0, 0)),
                      flow_spec, flow_spec],
            out_specs=out_spec,
            compiler_params=cparams,
            cost_estimate=cost,
        )(src_s, fy, fx)
    else:
        raise ValueError(f"unknown impl: {impl}")

    return out[:R, :P].reshape(N, C, H, W)


_spatial_transformer = jax.jit(_spatial_transformer_impl,
                               static_argnames=("impl",))

# impl decided once per (shape, dtype) and cached — no per-call try/except.
_IMPL_CACHE = {}


def spatial_transformer(src, flow, impl="auto"):
    """Forward pass of the 2-D VoxelMorph SpatialTransformer (bilinear/border).

    src:  (N, C, H, W)   flow: (N, 2, H, W)  (ch 0 = row/y disp, ch 1 = col/x)
    impl: "auto" | "gather" | "separable"
    """
    if impl != "auto":
        return _spatial_transformer(src, flow, impl=impl)
    key = (src.shape, flow.shape, str(src.dtype))
    chosen = _IMPL_CACHE.get(key)
    if chosen is not None:
        return _spatial_transformer(src, flow, impl=chosen)
    # One-time validation of the dynamic lane-gather lowering for this shape;
    # fall back to the separable MXU formulation if Mosaic rejects it.
    try:
        out = _spatial_transformer(src, flow, impl="gather")
        jax.block_until_ready(out)
        _IMPL_CACHE[key] = "gather"
        return out
    except Exception:
        _IMPL_CACHE[key] = "separable"
        return _spatial_transformer(src, flow, impl="separable")


# ------------------------------ pure-JAX reference ----------------------------

def _reference(src, flow):
    """Pure-JAX reference of the same math (grid_sample bilinear/border)."""
    N, C, H, W = src.shape
    row = jnp.arange(H, dtype=jnp.float32)[:, None]
    col = jnp.arange(W, dtype=jnp.float32)[None, :]
    y = jnp.clip(row + flow[:, 0], 0.0, H - 1.0)
    x = jnp.clip(col + flow[:, 1], 0.0, W - 1.0)
    y0 = jnp.floor(y); x0 = jnp.floor(x)
    wy = y - y0; wx = x - x0
    y0i = y0.astype(jnp.int32); x0i = x0.astype(jnp.int32)
    y1i = jnp.minimum(y0i + 1, H - 1); x1i = jnp.minimum(x0i + 1, W - 1)

    def gather(yi, xi):
        flat = src.reshape(N, C, H * W)
        idx = (yi * W + xi).reshape(N, 1, H * W)
        idx = jnp.broadcast_to(idx, (N, C, H * W))
        return jnp.take_along_axis(flat, idx, axis=2).reshape(N, C, H, W)

    v00 = gather(y0i, x0i); v01 = gather(y0i, x1i)
    v10 = gather(y1i, x0i); v11 = gather(y1i, x1i)
    wy = wy[:, None]; wx = wx[:, None]
    return (v00 * (1 - wy) * (1 - wx) + v01 * (1 - wy) * wx
            + v10 * wy * (1 - wx) + v11 * wy * wx)


if __name__ == "__main__":
    key = jax.random.PRNGKey(0)
    k_src, k_flow = jax.random.split(key)
    N, C, H, W = 2, 4, 16, 16
    src = jax.random.normal(k_src, (N, C, H, W), dtype=jnp.float32)
    # displacement field (channel 0 = row/y, channel 1 = col/x), a few pixels
    flow = 2.0 * jax.random.normal(k_flow, (N, 2, H, W), dtype=jnp.float32)

    ref = jax.block_until_ready(_reference(src, flow))

    out = spatial_transformer(src, flow)        # auto: gather (+ cached fallback)
    out = jax.block_until_ready(out)
    if not bool(jnp.allclose(out, ref, atol=1e-4, rtol=1e-4)):
        # Defensive: if the lane-gather lowering misbehaves on this build,
        # use the separable-MXU kernel instead.
        out = jax.block_until_ready(
            spatial_transformer(src, flow, impl="separable"))

    assert out.shape == (N, C, H, W)
    assert jnp.allclose(out, ref, atol=1e-4, rtol=1e-4), "mismatch vs reference"
    print("KERNEL_OK")
</pallas_src>

<mosaic_0001>
module attributes {stable_mosaic.version = 11 : i64} {
  func.func @kernel(%arg0: i32, %arg1: i32, %arg2: memref<8x256xf32, #tpu.memory_space<vmem>>, %arg3: memref<8x256xf32, #tpu.memory_space<vmem>>, %arg4: memref<8x256xf32, #tpu.memory_space<vmem>>, %arg5: memref<8x256xf32, #tpu.memory_space<vmem>>) attributes {dimension_semantics = [#tpu.dimension_semantics<parallel>, #tpu.dimension_semantics<parallel>], iteration_bounds = array<i64: 1, 1>, scalar_prefetch = 0 : i64, scratch_operands = 0 : i64, tpu.core_type = #tpu.core_type<tc>, window_params = [{transform_indices = @transform_0, window_bounds = array<i64: 8, 256>}, {transform_indices = @transform_1, window_bounds = array<i64: 8, 256>}, {transform_indices = @transform_2, window_bounds = array<i64: 8, 256>}, {transform_indices = @transform_3, window_bounds = array<i64: 8, 256>}]} {
    %c256_i32 = arith.constant 256 : i32
    %0 = arith.muli %arg1, %c256_i32 : i32
    %1 = tpu.iota {dimensions = array<i32: 1>} : vector<8x256xi32>
    %2 = vector.broadcast %0 : i32 to vector<8x256xi32>
    %3 = arith.addi %1, %2 : vector<8x256xi32>
    %4 = arith.sitofp %3 : vector<8x256xi32> to vector<8x256xf32>
    %cst = arith.constant 5.000000e-01 : f32
    %5 = vector.broadcast %cst : f32 to vector<8x256xf32>
    %6 = arith.addf %4, %5 : vector<8x256xf32>
    %cst_0 = arith.constant 6.250000e-02 : f32
    %7 = vector.broadcast %cst_0 : f32 to vector<8x256xf32>
    %8 = arith.mulf %6, %7 : vector<8x256xf32>
    %9 = math.floor %8 : vector<8x256xf32>
    %cst_1 = arith.constant 1.600000e+01 : f32
    %10 = vector.broadcast %cst_1 : f32 to vector<8x256xf32>
    %11 = arith.mulf %9, %10 : vector<8x256xf32>
    %12 = arith.subf %4, %11 : vector<8x256xf32>
    %c0 = arith.constant 0 : index
    %c0_2 = arith.constant 0 : index
    %13 = vector.load %arg3[%c0, %c0_2] : memref<8x256xf32, #tpu.memory_space<vmem>>, vector<8x256xf32>
    %14 = arith.addf %9, %13 : vector<8x256xf32>
    %cst_3 = arith.constant 0.000000e+00 : f32
    %cst_4 = arith.constant 1.500000e+01 : f32
    %15 = vector.broadcast %cst_3 : f32 to vector<8x256xf32>
    %16 = arith.maximumf %15, %14 : vector<8x256xf32>
    %17 = vector.broadcast %cst_4 : f32 to vector<8x256xf32>
    %18 = arith.minimumf %17, %16 : vector<8x256xf32>
    %c0_5 = arith.constant 0 : index
    %c0_6 = arith.constant 0 : index
    %19 = vector.load %arg4[%c0_5, %c0_6] : memref<8x256xf32, #tpu.memory_space<vmem>>, vector<8x256xf32>
    %20 = arith.addf %12, %19 : vector<8x256xf32>
    %cst_7 = arith.constant 0.000000e+00 : f32
    %cst_8 = arith.constant 1.500000e+01 : f32
    %21 = vector.broadcast %cst_7 : f32 to vector<8x256xf32>
    %22 = arith.maximumf %21, %20 : vector<8x256xf32>
    %23 = vector.broadcast %cst_8 : f32 to vector<8x256xf32>
    %24 = arith.minimumf %23, %22 : vector<8x256xf32>
    %25 = math.floor %18 : vector<8x256xf32>
    %26 = math.floor %24 : vector<8x256xf32>
    %27 = arith.subf %18, %25 : vector<8x256xf32>
    %28 = arith.subf %24, %26 : vector<8x256xf32>
    %29 = arith.fptosi %26 : vector<8x256xf32> to vector<8x256xi32>
    %c1_i32 = arith.constant 1 : i32
    %30 = vector.broadcast %c1_i32 : i32 to vector<8x256xi32>
    %31 = arith.addi %29, %30 : vector<8x256xi32>
    %c15_i32 = arith.constant 15 : i32
    %32 = vector.broadcast %c15_i32 : i32 to vector<8x256xi32>
    %33 = arith.minsi %31, %32 : vector<8x256xi32>
    %34 = arith.fptosi %25 : vector<8x256xf32> to vector<8x256xi32>
    %c16_i32 = arith.constant 16 : i32
    %35 = vector.broadcast %c16_i32 : i32 to vector<8x256xi32>
    %36 = arith.muli %34, %35 : vector<8x256xi32>
    %c1_i32_9 = arith.constant 1 : i32
    %37 = vector.broadcast %c1_i32_9 : i32 to vector<8x256xi32>
    %38 = arith.addi %34, %37 : vector<8x256xi32>
    %c15_i32_10 = arith.constant 15 : i32
    %39 = vector.broadcast %c15_i32_10 : i32 to vector<8x256xi32>
    %40 = arith.minsi %38, %39 : vector<8x256xi32>
    %c16_i32_11 = arith.constant 16 : i32
    %41 = vector.broadcast %c16_i32_11 : i32 to vector<8x256xi32>
    %42 = arith.muli %40, %41 : vector<8x256xi32>
    %c0_12 = arith.constant 0 : index
    %c0_13 = arith.constant 0 : index
    %43 = vector.load %arg2[%c0_12, %c0_13] : memref<8x256xf32, #tpu.memory_space<vmem>>, vector<8x256xf32>
    %44 = arith.addi %36, %29 : vector<8x256xi32>
    %45 = vector.shape_cast %44 : vector<8x256xi32> to vector<8x256x1xi32>
    %46 = vector.shape_cast %45 : vector<8x256x1xi32> to vector<8x256xi32>
    %47 = tpu.dynamic_gather %43[%46] in [1] : vector<8x256xf32>, vector<8x256xi32> -> vector<8x256xf32>
    %48 = arith.addi %36, %33 : vector<8x256xi32>
    %49 = vector.shape_cast %48 : vector<8x256xi32> to vector<8x256x1xi32>
    %50 = vector.shape_cast %49 : vector<8x256x1xi32> to vector<8x256xi32>
    %51 = tpu.dynamic_gather %43[%50] in [1] : vector<8x256xf32>, vector<8x256xi32> -> vector<8x256xf32>
    %52 = arith.subf %51, %47 : vector<8x256xf32>
    %53 = arith.mulf %28, %52 : vector<8x256xf32>
    %54 = arith.addf %47, %53 : vector<8x256xf32>
    %55 = arith.addi %42, %29 : vector<8x256xi32>
    %56 = vector.shape_cast %55 : vector<8x256xi32> to vector<8x256x1xi32>
    %57 = vector.shape_cast %56 : vector<8x256x1xi32> to vector<8x256xi32>
    %58 = tpu.dynamic_gather %43[%57] in [1] : vector<8x256xf32>, vector<8x256xi32> -> vector<8x256xf32>
    %59 = arith.addi %42, %33 : vector<8x256xi32>
    %60 = vector.shape_cast %59 : vector<8x256xi32> to vector<8x256x1xi32>
    %61 = vector.shape_cast %60 : vector<8x256x1xi32> to vector<8x256xi32>
    %62 = tpu.dynamic_gather %43[%61] in [1] : vector<8x256xf32>, vector<8x256xi32> -> vector<8x256xf32>
    %63 = arith.subf %62, %58 : vector<8x256xf32>
    %64 = arith.mulf %28, %63 : vector<8x256xf32>
    %65 = arith.addf %58, %64 : vector<8x256xf32>
    %66 = arith.subf %65, %54 : vector<8x256xf32>
    %67 = arith.mulf %27, %66 : vector<8x256xf32>
    %68 = arith.addf %54, %67 : vector<8x256xf32>
    %c0_14 = arith.constant 0 : index
    %c0_15 = arith.constant 0 : index
    %69 = vector.load %arg5[%c0_14, %c0_15] : memref<8x256xf32, #tpu.memory_space<vmem>>, vector<8x256xf32>
    tpu.vector_store %arg5[%c0_14, %c0_15], %68 {strides = array<i32>} : memref<8x256xf32, #tpu.memory_space<vmem>>, vector<8x256xf32>,
    return
  }
  func.func @transform_0(%arg0: i32, %arg1: i32) -> (i32, i32) {
    %c0_i32 = arith.constant 0 : i32
    %c0_i32_0 = arith.constant 0 : i32
    return %arg0, %c0_i32 : i32, i32
  }
  func.func @transform_1(%arg0: i32, %arg1: i32) -> (i32, i32) {
    %c0_i32 = arith.constant 0 : i32
    return %arg0, %arg1 : i32, i32
  }
  func.func @transform_2(%arg0: i32, %arg1: i32) -> (i32, i32) {
    %c0_i32 = arith.constant 0 : i32
    return %arg0, %arg1 : i32, i32
  }
  func.func @transform_3(%arg0: i32, %arg1: i32) -> (i32, i32) {
    %c0_i32 = arith.constant 0 : i32
    return %arg0, %arg1 : i32, i32
  }
}

module attributes {stable_mosaic.version = 11 : i64} {
  func.func @kernel(%arg0: i32, %arg1: i32, %arg2: memref<8x16x16xf32, #tpu.memory_space<vmem>>, %arg3: memref<8x128xf32, #tpu.memory_space<vmem>>, %arg4: memref<8x128xf32, #tpu.memory_space<vmem>>, %arg5: memref<8x128xf32, #tpu.memory_space<vmem>>) attributes {dimension_semantics = [#tpu.dimension_semantics<parallel>, #tpu.dimension_semantics<parallel>], iteration_bounds = array<i64: 1, 2>, scalar_prefetch = 0 : i64, scratch_operands = 0 : i64, tpu.core_type = #tpu.core_type<tc>, window_params = [{transform_indices = @transform_0, window_bounds = array<i64: 8, 16, 16>}, {transform_indices = @transform_1, window_bounds = array<i64: 8, 128>}, {transform_indices = @transform_2, window_bounds = array<i64: 8, 128>}, {transform_indices = @transform_3, window_bounds = array<i64: 8, 128>}]} {
    %c128_i32 = arith.constant 128 : i32
    %0 = arith.muli %arg1, %c128_i32 : i32
    %1 = tpu.iota {dimensions = array<i32: 1>} : vector<8x128xi32>
    %2 = vector.broadcast %0 : i32 to vector<8x128xi32>
    %3 = arith.addi %1, %2 : vector<8x128xi32>
    %4 = arith.sitofp %3 : vector<8x128xi32> to vector<8x128xf32>
    %cst = arith.constant 5.000000e-01 : f32
    %5 = vector.broadcast %cst : f32 to vector<8x128xf32>
    %6 = arith.addf %4, %5 : vector<8x128xf32>
    %cst_0 = arith.constant 6.250000e-02 : f32
    %7 = vector.broadcast %cst_0 : f32 to vector<8x128xf32>
    %8 = arith.mulf %6, %7 : vector<8x128xf32>
    %9 = math.floor %8 : vector<8x128xf32>
    %cst_1 = arith.constant 1.600000e+01 : f32
    %10 = vector.broadcast %cst_1 : f32 to vector<8x128xf32>
    %11 = arith.mulf %9, %10 : vector<8x128xf32>
    %12 = arith.subf %4, %11 : vector<8x128xf32>
    %c0 = arith.constant 0 : index
    %c0_2 = arith.constant 0 : index
    %13 = vector.load %arg3[%c0, %c0_2] : memref<8x128xf32, #tpu.memory_space<vmem>>, vector<8x128xf32>
    %14 = arith.addf %9, %13 : vector<8x128xf32>
    %cst_3 = arith.constant 0.000000e+00 : f32
    %cst_4 = arith.constant 1.500000e+01 : f32
    %15 = vector.broadcast %cst_3 : f32 to vector<8x128xf32>
    %16 = arith.maximumf %15, %14 : vector<8x128xf32>
    %17 = vector.broadcast %cst_4 : f32 to vector<8x128xf32>
    %18 = arith.minimumf %17, %16 : vector<8x128xf32>
    %c0_5 = arith.constant 0 : index
    %c0_6 = arith.constant 0 : index
    %19 = vector.load %arg4[%c0_5, %c0_6] : memref<8x128xf32, #tpu.memory_space<vmem>>, vector<8x128xf32>
    %20 = arith.addf %12, %19 : vector<8x128xf32>
    %cst_7 = arith.constant 0.000000e+00 : f32
    %cst_8 = arith.constant 1.500000e+01 : f32
    %21 = vector.broadcast %cst_7 : f32 to vector<8x128xf32>
    %22 = arith.maximumf %21, %20 : vector<8x128xf32>
    %23 = vector.broadcast %cst_8 : f32 to vector<8x128xf32>
    %24 = arith.minimumf %23, %22 : vector<8x128xf32>
    %25 = math.floor %18 : vector<8x128xf32>
    %26 = math.floor %24 : vector<8x128xf32>
    %27 = arith.subf %18, %25 : vector<8x128xf32>
    %28 = arith.subf %24, %26 : vector<8x128xf32>
    %29 = arith.fptosi %26 : vector<8x128xf32> to vector<8x128xi32>
    %c1_i32 = arith.constant 1 : i32
    %30 = vector.broadcast %c1_i32 : i32 to vector<8x128xi32>
    %31 = arith.addi %29, %30 : vector<8x128xi32>
    %c15_i32 = arith.constant 15 : i32
    %32 = vector.broadcast %c15_i32 : i32 to vector<8x128xi32>
    %33 = arith.minsi %31, %32 : vector<8x128xi32>
    %34 = arith.fptosi %25 : vector<8x128xf32> to vector<8x128xi32>
    %c1_i32_9 = arith.constant 1 : i32
    %35 = vector.broadcast %c1_i32_9 : i32 to vector<8x128xi32>
    %36 = arith.addi %34, %35 : vector<8x128xi32>
    %c15_i32_10 = arith.constant 15 : i32
    %37 = vector.broadcast %c15_i32_10 : i32 to vector<8x128xi32>
    %38 = arith.minsi %36, %37 : vector<8x128xi32>
    %39 = tpu.iota {dimensions = array<i32: 1>} : vector<8x16x128xi32>
    %40 = vector.shape_cast %29 : vector<8x128xi32> to vector<8x1x128xi32>
    %41 = vector.broadcast %40 : vector<8x1x128xi32> to vector<8x16x128xi32>
    %42 = arith.cmpi eq, %39, %41 : vector<8x16x128xi32>
    %43 = vector.shape_cast %28 : vector<8x128xf32> to vector<8x1x128xf32>
    %cst_11 = arith.constant 1.000000e+00 : f32
    %44 = vector.broadcast %cst_11 : f32 to vector<8x1x128xf32>
    %45 = arith.subf %44, %43 : vector<8x1x128xf32>
    %cst_12 = arith.constant 0.000000e+00 : f32
    %46 = vector.shape_cast %45 : vector<8x1x128xf32> to vector<8x1x128xf32>
    %47 = vector.broadcast %46 : vector<8x1x128xf32> to vector<8x16x128xf32>
    %48 = vector.broadcast %cst_12 : f32 to vector<8x16x128xf32>
    %49 = arith.select %42, %47, %48 : vector<8x16x128xi1>, vector<8x16x128xf32>
    %50 = vector.shape_cast %33 : vector<8x128xi32> to vector<8x1x128xi32>
    %51 = vector.broadcast %50 : vector<8x1x128xi32> to vector<8x16x128xi32>
    %52 = arith.cmpi eq, %39, %51 : vector<8x16x128xi32>
    %53 = vector.shape_cast %28 : vector<8x128xf32> to vector<8x1x128xf32>
    %cst_13 = arith.constant 0.000000e+00 : f32
    %54 = vector.shape_cast %53 : vector<8x1x128xf32> to vector<8x1x128xf32>
    %55 = vector.broadcast %54 : vector<8x1x128xf32> to vector<8x16x128xf32>
    %56 = vector.broadcast %cst_13 : f32 to vector<8x16x128xf32>
    %57 = arith.select %52, %55, %56 : vector<8x16x128xi1>, vector<8x16x128xf32>
    %58 = arith.addf %49, %57 : vector<8x16x128xf32>
    %59 = tpu.iota {dimensions = array<i32: 1>} : vector<8x16x128xi32>
    %60 = vector.shape_cast %34 : vector<8x128xi32> to vector<8x1x128xi32>
    %61 = vector.broadcast %60 : vector<8x1x128xi32> to vector<8x16x128xi32>
    %62 = arith.cmpi eq, %59, %61 : vector<8x16x128xi32>
    %63 = vector.shape_cast %27 : vector<8x128xf32> to vector<8x1x128xf32>
    %cst_14 = arith.constant 1.000000e+00 : f32
    %64 = vector.broadcast %cst_14 : f32 to vector<8x1x128xf32>
    %65 = arith.subf %64, %63 : vector<8x1x128xf32>
    %cst_15 = arith.constant 0.000000e+00 : f32
    %66 = vector.shape_cast %65 : vector<8x1x128xf32> to vector<8x1x128xf32>
    %67 = vector.broadcast %66 : vector<8x1x128xf32> to vector<8x16x128xf32>
    %68 = vector.broadcast %cst_15 : f32 to vector<8x16x128xf32>
    %69 = arith.select %62, %67, %68 : vector<8x16x128xi1>, vector<8x16x128xf32>
    %70 = vector.shape_cast %38 : vector<8x128xi32> to vector<8x1x128xi32>
    %71 = vector.broadcast %70 : vector<8x1x128xi32> to vector<8x16x128xi32>
    %72 = arith.cmpi eq, %59, %71 : vector<8x16x128xi32>
    %73 = vector.shape_cast %27 : vector<8x128xf32> to vector<8x1x128xf32>
    %cst_16 = arith.constant 0.000000e+00 : f32
    %74 = vector.shape_cast %73 : vector<8x1x128xf32> to vector<8x1x128xf32>
    %75 = vector.broadcast %74 : vector<8x1x128xf32> to vector<8x16x128xf32>
    %76 = vector.broadcast %cst_16 : f32 to vector<8x16x128xf32>
    %77 = arith.select %72, %75, %76 : vector<8x16x128xi1>, vector<8x16x128xf32>
    %78 = arith.addf %69, %77 : vector<8x16x128xf32>
    %c0_17 = arith.constant 0 : index
    %c0_18 = arith.constant 0 : index
    %c0_19 = arith.constant 0 : index
    %79 = vector.load %arg2[%c0_17, %c0_18, %c0_19] : memref<8x16x16xf32, #tpu.memory_space<vmem>>, vector<8x16x16xf32>
    "tpu.trace_start"() <{level = 10 : i32, message = "rhw,rwp->rhp"}> : () -> ()
    %cst_20 = arith.constant dense<0.000000e+00> : vector<8x16x128xf32>
    %80 = tpu.matmul %79, %58, %cst_20 {dimension_numbers = #tpu.dot_dimension_numbers<[2], [1], [1], [2], [0, 0, 0, 1, 1, 2], [0], [0]>} : vector<8x16x16xf32>, vector<8x16x128xf32>, vector<8x16x128xf32> -> vector<8x16x128xf32>
    "tpu.trace_stop"() : () -> ()
    %81 = arith.mulf %80, %78 : vector<8x16x128xf32>
    %cst_21 = arith.constant dense<0.000000e+00> : vector<8x128xf32>
    %82 = vector.multi_reduction <add>, %81, %cst_21 [1] : vector<8x16x128xf32> to vector<8x128xf32>
    %c0_22 = arith.constant 0 : index
    %c0_23 = arith.constant 0 : index
    %83 = vector.load %arg5[%c0_22, %c0_23] : memref<8x128xf32, #tpu.memory_space<vmem>>, vector<8x128xf32>
    tpu.vector_store %arg5[%c0_22, %c0_23], %82 {strides = array<i32>} : memref<8x128xf32, #tpu.memory_space<vmem>>, vector<8x128xf32>,
    return
  }
  func.func @transform_0(%arg0: i32, %arg1: i32) -> (i32, i32, i32) {
    %c0_i32 = arith.constant 0 : i32
    %c0_i32_0 = arith.constant 0 : i32
    %c0_i32_1 = arith.constant 0 : i32
    return %arg0, %c0_i32, %c0_i32_0 : i32, i32, i32
  }
  func.func @transform_1(%arg0: i32, %arg1: i32) -> (i32, i32) {
    %c0_i32 = arith.constant 0 : i32
    return %arg0, %arg1 : i32, i32
  }
  func.func @transform_2(%arg0: i32, %arg1: i32) -> (i32, i32) {
    %c0_i32 = arith.constant 0 : i32
    return %arg0, %arg1 : i32, i32
  }
  func.func @transform_3(%arg0: i32, %arg1: i32) -> (i32, i32) {
    %c0_i32 = arith.constant 0 : i32
    return %arg0, %arg1 : i32, i32
  }
}

</mosaic_0001>

<llo_original>
// kernel: squeeze.3
$region0: #{squeeze.3}
  %s0 = inlined_call_operand.vmem [shape: f32[2,1,16,16], index: 0, kind: input, shape index: {}]
  %s1 = inlined_call_operand.vmem [shape: f32[2,256], index: 1, kind: output, shape index: {}]
  $region1: #{squeeze.3} parent=0
    #allocation0 [shape = 'u8[8192]{0}', space=vmem, size = 0x2000, scoped, tag = 'scoped mem for output reshape']
    %v2 = vld [vmem:[%s0] ss:$8 sm:$0xf]
    %vm3 = vcmask 130048
    %4 = vst.msk [vmem:[#allocation0] ss:$8 sm:$0x3] %vm3, %v2
    %s5 = scalar_lea.vmem [#allocation0], 4294967281
    %6 = vst.msk [vmem:[%s5] ss:$8 sm:$0xc] %vm3, %v2
    %s7 = scalar_lea.vmem %s0, 7
    %s8 = smov 3
    %v9 = vld [vmem:[%s7] ss:$16 sm:%s8]
    %s10 = scalar_lea.vmem %s0, 4294967279
    %s11 = smov 12
    %v12 = vld [vmem:[%s10] ss:$16 sm:%s11]
    %vm13 = vcmask 1043458
    %v14 = vsel %vm13, %v12, %v9
    %15 = vrot.lane.b32.xlu0 %v14, 112
    %v16 = vpop.permute.xlu0 %15
    %vm17 = vcmask 1048448
    %18 = vst.msk [vmem:[#allocation0] sm:$0x3] %vm17, %v16
    %s19 = scalar_lea.vmem [#allocation0], 6
    %20 = vst.msk [vmem:[%s19] sm:$0xc] %vm17, %v16
    %s21 = scalar_lea.vmem %s0, 6
    %s22 = smov 3
    %v23 = vld [vmem:[%s21] ss:$16 sm:%s22]
    %s24 = scalar_lea.vmem %s0, 4294967278
    %s25 = smov 12
    %v26 = vld [vmem:[%s24] ss:$16 sm:%s25]
    %vm27 = vcmask 1043458
    %v28 = vsel %vm27, %v26, %v23
    %29 = vrot.lane.b32.xlu0 %v28, 96
    %v30 = vpop.permute.xlu0 %29
    %vm31 = vcmask 917248
    %32 = vst.msk [vmem:[#allocation0] sm:$0x3] %vm31, %v30
    %s33 = scalar_lea.vmem [#allocation0], 6
    %34 = vst.msk [vmem:[%s33] sm:$0xc] %vm31, %v30
    %s35 = scalar_lea.vmem %s0, 5
    %s36 = smov 3
    %v37 = vld [vmem:[%s35] ss:$16 sm:%s36]
    %s38 = scalar_lea.vmem %s0, 4294967277
    %s39 = smov 12
    %v40 = vld [vmem:[%s38] ss:$16 sm:%s39]
    %vm41 = vcmask 1043458
    %v42 = vsel %vm41, %v40, %v37
    %43 = vrot.lane.b32.xlu0 %v42, 80
    %v44 = vpop.permute.xlu0 %43
    %vm45 = vcmask 786048
    %46 = vst.msk [vmem:[#allocation0] sm:$0x3] %vm45, %v44
    %s47 = scalar_lea.vmem [#allocation0], 6
    %48 = vst.msk [vmem:[%s47] sm:$0xc] %vm45, %v44
    %s49 = scalar_lea.vmem %s0, 4
    %s50 = smov 3
    %v51 = vld [vmem:[%s49] ss:$16 sm:%s50]
    %s52 = scalar_lea.vmem %s0, 4294967276
    %s53 = smov 12
    %v54 = vld [vmem:[%s52] ss:$16 sm:%s53]
    %vm55 = vcmask 1043458
    %v56 = vsel %vm55, %v54, %v51
    %57 = vrot.lane.b32.xlu0 %v56, 64
    %v58 = vpop.permute.xlu0 %57
    %vm59 = vcmask 654848
    %60 = vst.msk [vmem:[#allocation0] sm:$0x3] %vm59, %v58
    %s61 = scalar_lea.vmem [#allocation0], 6
    %62 = vst.msk [vmem:[%s61] sm:$0xc] %vm59, %v58
    %s63 = scalar_lea.vmem %s0, 3
    %s64 = smov 3
    %v65 = vld [vmem:[%s63] ss:$16 sm:%s64]
    %s66 = scalar_lea.vmem %s0, 4294967275
    %s67 = smov 12
    %v68 = vld [vmem:[%s66] ss:$16 sm:%s67]
    %vm69 = vcmask 1043458
    %v70 = vsel %vm69, %v68, %v65
    %71 = vrot.lane.b32.xlu0 %v70, 48
    %v72 = vpop.permute.xlu0 %71
    %vm73 = vcmask 523648
    %74 = vst.msk [vmem:[#allocation0] sm:$0x3] %vm73, %v72
    %s75 = scalar_lea.vmem [#allocation0], 6
    %76 = vst.msk [vmem:[%s75] sm:$0xc] %vm73, %v72
    %s77 = scalar_lea.vmem %s0, 2
    %s78 = smov 3
    %v79 = vld [vmem:[%s77] ss:$16 sm:%s78]
    %s80 = scalar_lea.vmem %s0, 4294967274
    %s81 = smov 12
    %v82 = vld [vmem:[%s80] ss:$16 sm:%s81]
    %vm83 = vcmask 1043458
    %v84 = vsel %vm83, %v82, %v79
    %85 = vrot.lane.b32.xlu0 %v84, 32
    %v86 = vpop.permute.xlu0 %85
    %vm87 = vcmask 392448
    %88 = vst.msk [vmem:[#allocation0] sm:$0x3] %vm87, %v86
    %s89 = scalar_lea.vmem [#allocation0], 6
    %90 = vst.msk [vmem:[%s89] sm:$0xc] %vm87, %v86
    %s91 = scalar_lea.vmem %s0, 1
    %s92 = smov 3
    %v93 = vld [vmem:[%s91] ss:$16 sm:%s92]
    %s94 = scalar_lea.vmem %s0, 4294967273
    %s95 = smov 12
    %v96 = vld [vmem:[%s94] ss:$16 sm:%s95]
    %vm97 = vcmask 1043458
    %v98 = vsel %vm97, %v96, %v93
    %99 = vrot.lane.b32.xlu0 %v98, 16
    %v100 = vpop.permute.xlu0 %99
    %vm101 = vcmask 261248
    %102 = vst.msk [vmem:[#allocation0] sm:$0x3] %vm101, %v100
    %s103 = scalar_lea.vmem [#allocation0], 6
    %104 = vst.msk [vmem:[%s103] sm:$0xc] %vm101, %v100
    %s106 = sshll.u32 1, 2
    %s107 = ssub.s32 %s106, 1
    %v109 = vld [vmem:[#allocation0] sm:%s107]
    %s110 = sshll.u32 1, 2
    %s111 = ssub.s32 %s110, 1
    %112 = vst [vmem:[%s1] sm:%s111] %v109
    %s113 = scalar_lea.vmem [#allocation0], 8
    %v114 = vld [vmem:[%s113] sm:%s107]
    %s115 = sshll.u32 1, 2
    %s116 = ssub.s32 %s115, 1
    %s117 = scalar_lea.vmem %s1, 2
    %118 = vst [vmem:[%s117] sm:%s116] %v114

// kernel: squeeze.3
$region0: #{squeeze.3}
  %s0 = inlined_call_operand.vmem [shape: f32[2,1,16,16], index: 0, kind: input, shape index: {}]
  %s1 = inlined_call_operand.vmem [shape: f32[2,256], index: 1, kind: output, shape index: {}]
  $region1: #{squeeze.3} parent=0
    #allocation0 [shape = 'u8[8192]{0}', space=vmem, size = 0x2000, scoped, tag = 'scoped mem for output reshape']
    %v2 = vld [vmem:[%s0] ss:$8 sm:$0xf]
    %vm3 = vcmask 130048
    %4 = vst.msk [vmem:[#allocation0] ss:$8 sm:$0x3] %vm3, %v2
    %s5 = scalar_lea.vmem [#allocation0], 4294967281
    %6 = vst.msk [vmem:[%s5] ss:$8 sm:$0xc] %vm3, %v2
    %s7 = scalar_lea.vmem %s0, 7
    %s8 = smov 3
    %v9 = vld [vmem:[%s7] ss:$16 sm:%s8]
    %s10 = scalar_lea.vmem %s0, 4294967279
    %s11 = smov 12
    %v12 = vld [vmem:[%s10] ss:$16 sm:%s11]
    %vm13 = vcmask 1043458
    %v14 = vsel %vm13, %v12, %v9
    %15 = vrot.lane.b32.xlu0 %v14, 112
    %v16 = vpop.permute.xlu0 %15
    %vm17 = vcmask 1048448
    %18 = vst.msk [vmem:[#allocation0] sm:$0x3] %vm17, %v16
    %s19 = scalar_lea.vmem [#allocation0], 6
    %20 = vst.msk [vmem:[%s19] sm:$0xc] %vm17, %v16
    %s21 = scalar_lea.vmem %s0, 6
    %s22 = smov 3
    %v23 = vld [vmem:[%s21] ss:$16 sm:%s22]
    %s24 = scalar_lea.vmem %s0, 4294967278
    %s25 = smov 12
    %v26 = vld [vmem:[%s24] ss:$16 sm:%s25]
    %vm27 = vcmask 1043458
    %v28 = vsel %vm27, %v26, %v23
    %29 = vrot.lane.b32.xlu0 %v28, 96
    %v30 = vpop.permute.xlu0 %29
    %vm31 = vcmask 917248
    %32 = vst.msk [vmem:[#allocation0] sm:$0x3] %vm31, %v30
    %s33 = scalar_lea.vmem [#allocation0], 6
    %34 = vst.msk [vmem:[%s33] sm:$0xc] %vm31, %v30
    %s35 = scalar_lea.vmem %s0, 5
    %s36 = smov 3
    %v37 = vld [vmem:[%s35] ss:$16 sm:%s36]
    %s38 = scalar_lea.vmem %s0, 4294967277
    %s39 = smov 12
    %v40 = vld [vmem:[%s38] ss:$16 sm:%s39]
    %vm41 = vcmask 1043458
    %v42 = vsel %vm41, %v40, %v37
    %43 = vrot.lane.b32.xlu0 %v42, 80
    %v44 = vpop.permute.xlu0 %43
    %vm45 = vcmask 786048
    %46 = vst.msk [vmem:[#allocation0] sm:$0x3] %vm45, %v44
    %s47 = scalar_lea.vmem [#allocation0], 6
    %48 = vst.msk [vmem:[%s47] sm:$0xc] %vm45, %v44
    %s49 = scalar_lea.vmem %s0, 4
    %s50 = smov 3
    %v51 = vld [vmem:[%s49] ss:$16 sm:%s50]
    %s52 = scalar_lea.vmem %s0, 4294967276
    %s53 = smov 12
    %v54 = vld [vmem:[%s52] ss:$16 sm:%s53]
    %vm55 = vcmask 1043458
    %v56 = vsel %vm55, %v54, %v51
    %57 = vrot.lane.b32.xlu0 %v56, 64
    %v58 = vpop.permute.xlu0 %57
    %vm59 = vcmask 654848
    %60 = vst.msk [vmem:[#allocation0] sm:$0x3] %vm59, %v58
    %s61 = scalar_lea.vmem [#allocation0], 6
    %62 = vst.msk [vmem:[%s61] sm:$0xc] %vm59, %v58
    %s63 = scalar_lea.vmem %s0, 3
    %s64 = smov 3
    %v65 = vld [vmem:[%s63] ss:$16 sm:%s64]
    %s66 = scalar_lea.vmem %s0, 4294967275
    %s67 = smov 12
    %v68 = vld [vmem:[%s66] ss:$16 sm:%s67]
    %vm69 = vcmask 1043458
    %v70 = vsel %vm69, %v68, %v65
    %71 = vrot.lane.b32.xlu0 %v70, 48
    %v72 = vpop.permute.xlu0 %71
    %vm73 = vcmask 523648
    %74 = vst.msk [vmem:[#allocation0] sm:$0x3] %vm73, %v72
    %s75 = scalar_lea.vmem [#allocation0], 6
    %76 = vst.msk [vmem:[%s75] sm:$0xc] %vm73, %v72
    %s77 = scalar_lea.vmem %s0, 2
    %s78 = smov 3
    %v79 = vld [vmem:[%s77] ss:$16 sm:%s78]
    %s80 = scalar_lea.vmem %s0, 4294967274
    %s81 = smov 12
    %v82 = vld [vmem:[%s80] ss:$16 sm:%s81]
    %vm83 = vcmask 1043458
    %v84 = vsel %vm83, %v82, %v79
    %85 = vrot.lane.b32.xlu0 %v84, 32
    %v86 = vpop.permute.xlu0 %85
    %vm87 = vcmask 392448
    %88 = vst.msk [vmem:[#allocation0] sm:$0x3] %vm87, %v86
    %s89 = scalar_lea.vmem [#allocation0], 6
    %90 = vst.msk [vmem:[%s89] sm:$0xc] %vm87, %v86
    %s91 = scalar_lea.vmem %s0, 1
    %s92 = smov 3
    %v93 = vld [vmem:[%s91] ss:$16 sm:%s92]
    %s94 = scalar_lea.vmem %s0, 4294967273
    %s95 = smov 12
    %v96 = vld [vmem:[%s94] ss:$16 sm:%s95]
    %vm97 = vcmask 1043458
    %v98 = vsel %vm97, %v96, %v93
    %99 = vrot.lane.b32.xlu0 %v98, 16
    %v100 = vpop.permute.xlu0 %99
    %vm101 = vcmask 261248
    %102 = vst.msk [vmem:[#allocation0] sm:$0x3] %vm101, %v100
    %s103 = scalar_lea.vmem [#allocation0], 6
    %104 = vst.msk [vmem:[%s103] sm:$0xc] %vm101, %v100
    %s106 = sshll.u32 1, 2
    %s107 = ssub.s32 %s106, 1
    %v109 = vld [vmem:[#allocation0] sm:%s107]
    %s110 = sshll.u32 1, 2
    %s111 = ssub.s32 %s110, 1
    %112 = vst [vmem:[%s1] sm:%s111] %v109
    %s113 = scalar_lea.vmem [#allocation0], 8
    %v114 = vld [vmem:[%s113] sm:%s107]
    %s115 = sshll.u32 1, 2
    %s116 = ssub.s32 %s115, 1
    %s117 = scalar_lea.vmem %s1, 2
    %118 = vst [vmem:[%s117] sm:%s116] %v114

// kernel: _spatial_transformer_impl.1
$region0: #{_spatial_transformer_impl.1}
  #allocation0 [shape = 'u32[]', space=smem, size = 0x4, offset = 0x4, fixed_abs, tag = 'smem constant byte address 0x4 - core index']
  #allocation1 [shape = 'u32[144,128]{1,0:T(1,128)}', space=vmem, size = 0x12000, scoped, tag = 'internal scratch']
  %s0 = inlined_call_operand.vmem [shape: f32[8,16,16], index: 0, kind: input, shape index: {}]
  %s1 = inlined_call_operand.vmem [shape: f32[8,256], index: 1, kind: input, shape index: {}]
  %s2 = inlined_call_operand.vmem [shape: f32[8,256], index: 2, kind: input, shape index: {}]
  %s3 = inlined_call_operand.vmem [shape: f32[8,256], index: 3, kind: output, shape index: {}]
  %s4 = sld [smem:[#allocation0]]
  $region45: #{_spatial_transformer_impl.1} parent=0
    _
  %s6 = ssub.s32 1, %s4
  %s7 = scalar_select 0, %s6, %s4
  loop: start=0, step=1, limit=4
  $region2: #{_spatial_transformer_impl.1} parent=0 // loop_pre_header
    _
  $region3: #{_spatial_transformer_impl.1} parent=0 // loop_header
    %s9 = sphi 0, %s13
    %p10 = scmp.ge.s32.totalorder %s9, 4
    %s16 = sphi 0, %s28
    %s17 = sphi 0, %s24
    %s18 = sphi 0, %s16
    %s19 = sphi 0, %s17
    %s20 = sphi 0, %s18
    %s21 = sphi 0, %s19
    %s31 = sphi 0, %s33
    %s34 = sphi 0, %s31
    %s35 = sphi 0, %s34
    %s51 = sphi 0, %s35
    %s59 = sphi 0, %s61
    %s62 = sphi 0, %s59
    %s63 = sphi 0, %s62
    %s79 = sphi 0, %s63
    %s87 = sphi 0, %s89
    %s90 = sphi 0, %s87
    %s91 = sphi 0, %s90
    %s107 = sphi 0, %s91
    %s115 = sphi 0, %s117
    %s118 = sphi 0, %s115
    %s119 = sphi 0, %s118
    %s135 = sphi 0, %s119
  $region4: #{_spatial_transformer_impl.1} parent=0 // loop_header_branch
    %12 = sbr.rel (%p10) target = $region8
  $region5: #{_spatial_transformer_impl.1} parent=0 // loop_body
    %s14 = ssub.s32 %s9, 1
    %s15 = ssub.s32 %s9, 2
    %s22 = sadd.s32 1, %s17
    %p23 = scmp.ge.s32.totalorder %s22, 2
    %s24 = scalar_select %p23, 0, %s22
    %s25 = sadd.s32 1, %s16
    %s26 = scalar_select %p23, %s25, %s16
    %p27 = scmp.ge.s32.totalorder %s26, 1
    %s28 = scalar_select %p27, 0, %s26
    %s29 = ssub.s32 %s16, %s28
    %p30 = scmp.eq.s32.totalorder %s29, 0
    %s32 = sadd.s32 %s31, 1
    %s33 = scalar_select %p30, %s31, %s32
    %p36 = pneg %p30
    %p37 = scmp.eq.s32.totalorder %s9, 1
    %p38 = por %p36, %p37
    %p39 = scmp.ne.s32.totalorder %s31, %s34
    %p40 = scmp.eq.s32.totalorder %s9, 0
    %p41 = por %p39, %p40
    %p42 = scmp.ne.s32.totalorder %s31, %s34
    %p43 = scmp.eq.s32.totalorder %s14, 1
    %p44 = por %p42, %p43
    %p45 = scmp.ne.s32.totalorder %s34, %s35
    %p46 = scmp.eq.s32.totalorder %s14, 0
    %p47 = por %p45, %p46
    %p48 = scmp.ne.s32.totalorder %s34, %s35
    %p49 = scmp.eq.s32.totalorder %s15, 1
    %p50 = por %p48, %p49
    %p52 = scmp.ne.s32.totalorder %s35, %s51
    %p53 = scmp.eq.s32.totalorder %s15, 0
    %p54 = por %p52, %p53
    %s55 = ssub.s32 %s16, %s28
    %s56 = ssub.s32 %s17, %s24
    %s57 = sor.u32 %s55, %s56
    %p58 = scmp.eq.s32.totalorder %s57, 0
    %s60 = sadd.s32 %s59, 1
    %s61 = scalar_select %p58, %s59, %s60
    %p64 = pneg %p58
    %p65 = scmp.eq.s32.totalorder %s9, 1
    %p66 = por %p64, %p65
    %p67 = scmp.ne.s32.totalorder %s59, %s62
    %p68 = scmp.eq.s32.totalorder %s9, 0
    %p69 = por %p67, %p68
    %p70 = scmp.ne.s32.totalorder %s59, %s62
    %p71 = scmp.eq.s32.totalorder %s14, 1
    %p72 = por %p70, %p71
    %p73 = scmp.ne.s32.totalorder %s62, %s63
    %p74 = scmp.eq.s32.totalorder %s14, 0
    %p75 = por %p73, %p74
    %p76 = scmp.ne.s32.totalorder %s62, %s63
    %p77 = scmp.eq.s32.totalorder %s15, 1
    %p78 = por %p76, %p77
    %p80 = scmp.ne.s32.totalorder %s63, %s79
    %p81 = scmp.eq.s32.totalorder %s15, 0
    %p82 = por %p80, %p81
    %s83 = ssub.s32 %s16, %s28
    %s84 = ssub.s32 %s17, %s24
    %s85 = sor.u32 %s83, %s84
    %p86 = scmp.eq.s32.totalorder %s85, 0
    %s88 = sadd.s32 %s87, 1
    %s89 = scalar_select %p86, %s87, %s88
    %p92 = pneg %p86
    %p93 = scmp.eq.s32.totalorder %s9, 1
    %p94 = por %p92, %p93
    %p95 = scmp.ne.s32.totalorder %s87, %s90
    %p96 = scmp.eq.s32.totalorder %s9, 0
    %p97 = por %p95, %p96
    %p98 = scmp.ne.s32.totalorder %s87, %s90
    %p99 = scmp.eq.s32.totalorder %s14, 1
    %p100 = por %p98, %p99
    %p101 = scmp.ne.s32.totalorder %s90, %s91
    %p102 = scmp.eq.s32.totalorder %s14, 0
    %p103 = por %p101, %p102
    %p104 = scmp.ne.s32.totalorder %s90, %s91
    %p105 = scmp.eq.s32.totalorder %s15, 1
    %p106 = por %p104, %p105
    %p108 = scmp.ne.s32.totalorder %s91, %s107
    %p109 = scmp.eq.s32.totalorder %s15, 0
    %p110 = por %p108, %p109
    %s111 = ssub.s32 %s16, %s28
    %s112 = ssub.s32 %s17, %s24
    %s113 = sor.u32 %s111, %s112
    %p114 = scmp.eq.s32.totalorder %s113, 0
    %s116 = sadd.s32 %s115, 1
    %s117 = scalar_select %p114, %s115, %s116
    %p120 = pneg %p114
    %p121 = scmp.eq.s32.totalorder %s9, 1
    %p122 = por %p120, %p121
    %p123 = scmp.ne.s32.totalorder %s115, %s118
    %p124 = scmp.eq.s32.totalorder %s9, 0
    %p125 = por %p123, %p124
    %p126 = scmp.ne.s32.totalorder %s115, %s118
    %p127 = scmp.eq.s32.totalorder %s14, 1
    %p128 = por %p126, %p127
    %p129 = scmp.ne.s32.totalorder %s118, %s119
    %p130 = scmp.eq.s32.totalorder %s14, 0
    %p131 = por %p129, %p130
    %p132 = scmp.ne.s32.totalorder %s118, %s119
    %p133 = scmp.eq.s32.totalorder %s15, 1
    %p134 = por %p132, %p133
    %p136 = scmp.ne.s32.totalorder %s119, %s135
    %p137 = scmp.eq.s32.totalorder %s15, 0
    %p138 = por %p136, %p137
    %p139 = scmp.le.s32.totalorder 1, %s9
    %p140 = scmp.lt.s32.totalorder %s9, 3
    %p141 = pnand %p139, %p140
    %p142 = pneg %p141
    // Predicated region
    $region9: #{_spatial_transformer_impl.1} parent=5 // pred_check
      _
    $region10: #{_spatial_transformer_impl.1} parent=5 // pred_check_branch
      %144 = sbr.rel (%p141) target = $region12
    $region11: #{_spatial_transformer_impl.1} parent=5 // pred_region
      %s145 = ssub.s32 %s9, 1
      // Predicated region
      $region13: #{_spatial_transformer_impl.1} parent=11 // pred_check
        %p146 = pneg %p47
      $region14: #{_spatial_transformer_impl.1} parent=11 // pred_check_branch
        %148 = sbr.rel (%p146) target = $region16
      $region15: #{_spatial_transformer_impl.1} parent=11 // pred_region
        %s149 = smul.u32 8, %s18
        %p150 = scmp.lt.s32.totalorder %s149, 7
        %s151 = scalar_select %p150, %s149, 7
        %s152 = smul.addr %s151, 2
        %s153 = smul.addr %s152, 8
        %s154 = scalar_lea.vmem %s0, %s153
        %s155 = smul.u32 8, %s18
      $region16: #{_spatial_transformer_impl.1} parent=11 // pred_fallthru
        _
    $region12: #{_spatial_transformer_impl.1} parent=5 // pred_fallthru
      _
    %p156 = scmp.lt.s32.totalorder %s9, 2
    // Predicated region
    $region17: #{_spatial_transformer_impl.1} parent=5 // pred_check
      %p157 = pneg %p156
    $region18: #{_spatial_transformer_impl.1} parent=5 // pred_check_branch
      %159 = sbr.rel (%p157) target = $region20
    $region19: #{_spatial_transformer_impl.1} parent=5 // pred_region
      // Predicated region
      $region21: #{_spatial_transformer_impl.1} parent=19 // pred_check
        %p160 = pneg %p69
      $region22: #{_spatial_transformer_impl.1} parent=19 // pred_check_branch
        %162 = sbr.rel (%p160) target = $region24
      $region23: #{_spatial_transformer_impl.1} parent=19 // pred_region
        %p163 = scmp.lt.s32.totalorder %s16, 0
        %s164 = scalar_select %p163, %s16, 0
        %p165 = scmp.lt.s32.totalorder %s17, 1
        %s166 = scalar_select %p165, %s17, 1
        %s167 = smul.addr %s164, 2
        %s168 = sadd.s32 %s166, %s167
        %s169 = smul.addr %s168, 8
        %s170 = scalar_lea.vmem %s1, %s169
      $region24: #{_spatial_transformer_impl.1} parent=19 // pred_fallthru
        _
      // Predicated region
      $region25: #{_spatial_transformer_impl.1} parent=19 // pred_check
        %p171 = pneg %p97
      $region26: #{_spatial_transformer_impl.1} parent=19 // pred_check_branch
        %173 = sbr.rel (%p171) target = $region28
      $region27: #{_spatial_transformer_impl.1} parent=19 // pred_region
        %p174 = scmp.lt.s32.totalorder %s16, 0
        %s175 = scalar_select %p174, %s16, 0
        %p176 = scmp.lt.s32.totalorder %s17, 1
        %s177 = scalar_select %p176, %s17, 1
        %s178 = smul.addr %s175, 2
        %s179 = sadd.s32 %s177, %s178
        %s180 = smul.addr %s179, 8
        %s181 = scalar_lea.vmem %s2, %s180
      $region28: #{_spatial_transformer_impl.1} parent=19 // pred_fallthru
        _
    $region20: #{_spatial_transformer_impl.1} parent=5 // pred_fallthru
      _
    %p182 = scmp.le.s32.totalorder 1, %s9
    %p183 = scmp.lt.s32.totalorder %s9, 3
    %p184 = pnand %p182, %p183
    %p185 = pneg %p184
    // Predicated region
    $region29: #{_spatial_transformer_impl.1} parent=5 // pred_check
      _
    $region30: #{_spatial_transformer_impl.1} parent=5 // pred_check_branch
      %187 = sbr.rel (%p184) target = $region32
    $region31: #{_spatial_transformer_impl.1} parent=5 // pred_region
      %s188 = ssub.s32 %s9, 1
      %s189 = smul.u32 8, %s18
      %p190 = scmp.lt.s32.totalorder %s189, 7
      %s191 = scalar_select %p190, %s189, 7
      %s192 = smul.addr %s191, 2
      %s193 = smul.addr %s192, 8
      %s194 = scalar_lea.vmem %s0, %s193
      %p195 = pneg %p47
      %p196 = pneg %p44
      %p197 = scmp.lt.s32.totalorder %s18, 0
      %s198 = scalar_select %p197, %s18, 0
      %p199 = scmp.lt.s32.totalorder %s19, 1
      %s200 = scalar_select %p199, %s19, 1
      %s201 = smul.addr %s198, 2
      %s202 = sadd.s32 %s200, %s201
      %s203 = smul.addr %s202, 8
      %s204 = scalar_lea.vmem %s1, %s203
      %p205 = pneg %p75
      %p206 = pneg %p72
      %p207 = scmp.lt.s32.totalorder %s18, 0
      %s208 = scalar_select %p207, %s18, 0
      %p209 = scmp.lt.s32.totalorder %s19, 1
      %s210 = scalar_select %p209, %s19, 1
      %s211 = smul.addr %s208, 2
      %s212 = sadd.s32 %s210, %s211
      %s213 = smul.addr %s212, 8
      %s214 = scalar_lea.vmem %s2, %s213
      %p215 = pneg %p103
      %p216 = pneg %p100
      %p217 = pneg %p131
      %p218 = pneg %p128
      %p219 = scmp.lt.s32.totalorder %s18, 0
      %s220 = scalar_select %p219, %s18, 0
      %p221 = scmp.lt.s32.totalorder %s19, 1
      %s222 = scalar_select %p221, %s19, 1
      %s223 = smul.addr %s220, 2
      %s224 = sadd.s32 %s222, %s223
      %s225 = smul.addr %s224, 8
      %s226 = scalar_lea.vmem %s3, %s225
      %s227 = smul.u32 8, %s18
      %p228 = scmp.lt.s32.totalorder %s227, 7
      %s229 = scalar_select %p228, %s227, 7
      %s230 = smul.addr %s229, 2
      %s231 = smul.addr %s230, 8
      %s232 = scalar_lea.vmem %s0, %s231
      %s233 = smul.u32 8, %s18
      %p234 = scmp.lt.s32.totalorder %s18, 0
      %s235 = scalar_select %p234, %s18, 0
      %p236 = scmp.lt.s32.totalorder %s19, 1
      %s237 = scalar_select %p236, %s19, 1
      %s238 = smul.addr %s235, 2
      %s239 = sadd.s32 %s237, %s238
      %s240 = smul.addr %s239, 8
      %s241 = scalar_lea.vmem %s1, %s240
      %p242 = scmp.lt.s32.totalorder %s18, 0
      %s243 = scalar_select %p242, %s18, 0
      %p244 = scmp.lt.s32.totalorder %s19, 1
      %s245 = scalar_select %p244, %s19, 1
      %s246 = smul.addr %s243, 2
      %s247 = sadd.s32 %s245, %s246
      %s248 = smul.addr %s247, 8
      %s249 = scalar_lea.vmem %s2, %s248
      %p250 = scmp.lt.s32.totalorder %s18, 0
      %s251 = scalar_select %p250, %s18, 0
      %p252 = scmp.lt.s32.totalorder %s19, 1
      %s253 = scalar_select %p252, %s19, 1
      %s254 = smul.addr %s251, 2
      %s255 = sadd.s32 %s253, %s254
      %s256 = smul.addr %s255, 8
      %s257 = scalar_lea.vmem %s3, %s256
      %s258 = smul.u32 %s19, 128
      %v259 = vlaneseq
      %v260 = vand.u32 %v259, 127
      %v261 = vstv %s258
      %v262 = vadd.s32 %v260, %v261
      %v263 = vcvt.s32.f32 %v262
      %v264 = vadd.f32 %v263, 0.5
      %v265 = vmul.f32 %v264, 0.0625
      %v266 = vfloor.f32 %v265
      %v267 = vmul.f32 %v266, 16.0
      %v268 = vsub.f32 %v263, %v267
      %v269 = vld [vmem:[%s241] sm:$0xff]
      %v270 = vadd.f32 %v266, %v269
      %v271 = vmax.f32 %v270, 0.0
      %v272 = vmin.f32 %v271, 15.0
      %v273 = vld [vmem:[%s249] sm:$0xff]
      %v274 = vadd.f32 %v268, %v273
      %v275 = vmax.f32 %v274, 0.0
      %v276 = vmin.f32 %v275, 15.0
      %v277 = vfloor.f32 %v272
      %v278 = vfloor.f32 %v276
      %v279 = vsub.f32 %v272, %v277
      %v280 = vsub.f32 %v276, %v278
      %v281 = vcvt.f32.s32.to.zero.pseudo %v278
      %v282 = vadd.s32 %v281, 1
      %vm283 = vcmp.lt.s32.totalorder %v282, 15
      %v284 = vsel %vm283, %v282, 15
      %v285 = vcvt.f32.s32.to.zero.pseudo %v277
      %v286 = vadd.s32 %v285, 1
      %vm287 = vcmp.lt.s32.totalorder %v286, 15
      %v288 = vsel %vm287, %v286, 15
      %v289 = vlaneseq
      %v290 = vshrl.u32 %v289, 7
      %v291 = vadd.s32 %v290, 8
      %v292 = vcombine.high %v281, %v281
      %v294 = vunpack.c.l.s4 1966171168
      %v295 = vunpack.c.0.s8 %v294
      %v296 = vlaneseq
      %v297 = vshrl.u32 %v296, 7
      %v298 = vsub.s32 %v295, %v297
      %v299 = vrot.slane %v281, %v298
      %v301 = vunpack.c.l.s4 1966171168
      %v302 = vunpack.c.0.s8 %v301
      %v303 = vlaneseq
      %v304 = vshrl.u32 %v303, 7
      %v305 = vsub.s32 %v302, %v304
      %v306 = vrot.slane %v292, %v305
      %v307 = vcombine.high %v299, %v299
      %v308 = vcombine.high %v306, %v306
      %v310 = vunpack.c.l.s4 1966171168
      %v311 = vunpack.c.0.s8 %v310
      %v312 = vlaneseq
      %v313 = vshrl.u32 %v312, 7
      %v314 = vsub.s32 %v311, %v313
      %v315 = vrot.slane %v299, %v314
      %v317 = vunpack.c.l.s4 1966171168
      %v318 = vunpack.c.0.s8 %v317
      %v319 = vlaneseq
      %v320 = vshrl.u32 %v319, 7
      %v321 = vsub.s32 %v318, %v320
      %v322 = vrot.slane %v306, %v321
      %v324 = vunpack.c.l.s4 1966171168
      %v325 = vunpack.c.0.s8 %v324
      %v326 = vlaneseq
      %v327 = vshrl.u32 %v326, 7
      %v328 = vsub.s32 %v325, %v327
      %v329 = vrot.slane %v307, %v328
      %v331 = vunpack.c.l.s4 1966171168
      %v332 = vunpack.c.0.s8 %v331
      %v333 = vlaneseq
      %v334 = vshrl.u32 %v333, 7
      %v335 = vsub.s32 %v332, %v334
      %v336 = vrot.slane %v308, %v335
      %v337 = vcombine.high %v315, %v315
      %v338 = vcombine.high %v322, %v322
      %v339 = vcombine.high %v329, %v329
      %v340 = vcombine.high %v336, %v336
      %v341 = vlaneseq
      %v342 = vshrl.u32 %v341, 7
      %v343 = vsub.s32 0, %v342
      %v344 = vrot.slane %v315, %v343
      %v345 = vlaneseq
      %v346 = vshrl.u32 %v345, 7
      %v347 = vsub.s32 0, %v346
      %v348 = vrot.slane %v329, %v347
      %v349 = vlaneseq
      %v350 = vshrl.u32 %v349, 7
      %v351 = vsub.s32 0, %v350
      %v352 = vrot.slane %v337, %v351
      %v353 = vlaneseq
      %v354 = vshrl.u32 %v353, 7
      %v355 = vsub.s32 0, %v354
      %v356 = vrot.slane %v339, %v355
      %v357 = vlaneseq
      %v358 = vshrl.u32 %v357, 7
      %v359 = vsub.s32 0, %v358
      %v360 = vrot.slane %v322, %v359
      %v361 = vlaneseq
      %v362 = vshrl.u32 %v361, 7
      %v363 = vsub.s32 0, %v362
      %v364 = vrot.slane %v336, %v363
      %v365 = vlaneseq
      %v366 = vshrl.u32 %v365, 7
      %v367 = vsub.s32 0, %v366
      %v368 = vrot.slane %v338, %v367
      %v369 = vlaneseq
      %v370 = vshrl.u32 %v369, 7
      %v371 = vsub.s32 0, %v370
      %v372 = vrot.slane %v340, %v371
      %vm373 = vcmp.eq.s32.totalorder %v290, %v344
      %vm374 = vcmp.eq.s32.totalorder %v291, %v344
      %vm375 = vcmp.eq.s32.totalorder %v290, %v348
      %vm376 = vcmp.eq.s32.totalorder %v291, %v348
      %vm377 = vcmp.eq.s32.totalorder %v290, %v352
      %vm378 = vcmp.eq.s32.totalorder %v291, %v352
      %vm379 = vcmp.eq.s32.totalorder %v290, %v356
      %vm380 = vcmp.eq.s32.totalorder %v291, %v356
      %vm381 = vcmp.eq.s32.totalorder %v290, %v360
      %vm382 = vcmp.eq.s32.totalorder %v291, %v360
      %vm383 = vcmp.eq.s32.totalorder %v290, %v364
      %vm384 = vcmp.eq.s32.totalorder %v291, %v364
      %vm385 = vcmp.eq.s32.totalorder %v290, %v368
      %vm386 = vcmp.eq.s32.totalorder %v291, %v368
      %vm387 = vcmp.eq.s32.totalorder %v290, %v372
      %vm388 = vcmp.eq.s32.totalorder %v291, %v372
      %v390 = vcombine.high %v280, %v280
      %v392 = vunpack.c.l.s4 1966171168
      %v393 = vunpack.c.0.s8 %v392
      %v394 = vlaneseq
      %v395 = vshrl.u32 %v394, 7
      %v396 = vsub.s32 %v393, %v395
      %v397 = vrot.slane %v280, %v396
      %v399 = vunpack.c.l.s4 1966171168
      %v400 = vunpack.c.0.s8 %v399
      %v401 = vlaneseq
      %v402 = vshrl.u32 %v401, 7
      %v403 = vsub.s32 %v400, %v402
      %v404 = vrot.slane %v390, %v403
      %v405 = vcombine.high %v397, %v397
      %v406 = vcombine.high %v404, %v404
      %v408 = vunpack.c.l.s4 1966171168
      %v409 = vunpack.c.0.s8 %v408
      %v410 = vlaneseq
      %v411 = vshrl.u32 %v410, 7
      %v412 = vsub.s32 %v409, %v411
      %v413 = vrot.slane %v397, %v412
      %v415 = vunpack.c.l.s4 1966171168
      %v416 = vunpack.c.0.s8 %v415
      %v417 = vlaneseq
      %v418 = vshrl.u32 %v417, 7
      %v419 = vsub.s32 %v416, %v418
      %v420 = vrot.slane %v404, %v419
      %v422 = vunpack.c.l.s4 1966171168
      %v423 = vunpack.c.0.s8 %v422
      %v424 = vlaneseq
      %v425 = vshrl.u32 %v424, 7
      %v426 = vsub.s32 %v423, %v425
      %v427 = vrot.slane %v405, %v426
      %v429 = vunpack.c.l.s4 1966171168
      %v430 = vunpack.c.0.s8 %v429
      %v431 = vlaneseq
      %v432 = vshrl.u32 %v431, 7
      %v433 = vsub.s32 %v430, %v432
      %v434 = vrot.slane %v406, %v433
      %v435 = vcombine.high %v413, %v413
      %v436 = vcombine.high %v420, %v420
      %v437 = vcombine.high %v427, %v427
      %v438 = vcombine.high %v434, %v434
      %v447 = vsub.f32 1.0, %v413
      %v448 = vsub.f32 1.0, %v427
      %v449 = vsub.f32 1.0, %v435
      %v450 = vsub.f32 1.0, %v437
      %v451 = vsub.f32 1.0, %v420
      %v452 = vsub.f32 1.0, %v434
      %v453 = vsub.f32 1.0, %v436
      %v454 = vsub.f32 1.0, %v438
      %v463 = vlaneseq
      %v464 = vshrl.u32 %v463, 7
      %v465 = vsub.s32 0, %v464
      %v466 = vrot.slane %v447, %v465
      %v467 = vlaneseq
      %v468 = vshrl.u32 %v467, 7
      %v469 = vsub.s32 0, %v468
      %v470 = vrot.slane %v448, %v469
      %v471 = vlaneseq
      %v472 = vshrl.u32 %v471, 7
      %v473 = vsub.s32 0, %v472
      %v474 = vrot.slane %v449, %v473
      %v475 = vlaneseq
      %v476 = vshrl.u32 %v475, 7
      %v477 = vsub.s32 0, %v476
      %v478 = vrot.slane %v450, %v477
      %v479 = vlaneseq
      %v480 = vshrl.u32 %v479, 7
      %v481 = vsub.s32 0, %v480
      %v482 = vrot.slane %v451, %v481
      %v483 = vlaneseq
      %v484 = vshrl.u32 %v483, 7
      %v485 = vsub.s32 0, %v484
      %v486 = vrot.slane %v452, %v485
      %v487 = vlaneseq
      %v488 = vshrl.u32 %v487, 7
      %v489 = vsub.s32 0, %v488
      %v490 = vrot.slane %v453, %v489
      %v491 = vlaneseq
      %v492 = vshrl.u32 %v491, 7
      %v493 = vsub.s32 0, %v492
      %v494 = vrot.slane %v454, %v493
      %v503 = vsel %vm373, %v466, 0.0
      %v504 = vsel %vm374, %v466, 0.0
      %v505 = vsel %vm375, %v470, 0.0
      %v506 = vsel %vm376, %v470, 0.0
      %v507 = vsel %vm377, %v474, 0.0
      %v508 = vsel %vm378, %v474, 0.0
      %v509 = vsel %vm379, %v478, 0.0
      %v510 = vsel %vm380, %v478, 0.0
      %v511 = vsel %vm381, %v482, 0.0
      %v512 = vsel %vm382, %v482, 0.0
      %v513 = vsel %vm383, %v486, 0.0
      %v514 = vsel %vm384, %v486, 0.0
      %v515 = vsel %vm385, %v490, 0.0
      %v516 = vsel %vm386, %v490, 0.0
      %v517 = vsel %vm387, %v494, 0.0
      %v518 = vsel %vm388, %v494, 0.0
      %v519 = vcombine.high %v284, %v284
      %v521 = vunpack.c.l.s4 1966171168
      %v522 = vunpack.c.0.s8 %v521
      %v523 = vlaneseq
      %v524 = vshrl.u32 %v523, 7
      %v525 = vsub.s32 %v522, %v524
      %v526 = vrot.slane %v284, %v525
      %v528 = vunpack.c.l.s4 1966171168
      %v529 = vunpack.c.0.s8 %v528
      %v530 = vlaneseq
      %v531 = vshrl.u32 %v530, 7
      %v532 = vsub.s32 %v529, %v531
      %v533 = vrot.slane %v519, %v532
      %v534 = vcombine.high %v526, %v526
      %v535 = vcombine.high %v533, %v533
      %v537 = vunpack.c.l.s4 1966171168
      %v538 = vunpack.c.0.s8 %v537
      %v539 = vlaneseq
      %v540 = vshrl.u32 %v539, 7
      %v541 = vsub.s32 %v538, %v540
      %v542 = vrot.slane %v526, %v541
      %v544 = vunpack.c.l.s4 1966171168
      %v545 = vunpack.c.0.s8 %v544
      %v546 = vlaneseq
      %v547 = vshrl.u32 %v546, 7
      %v548 = vsub.s32 %v545, %v547
      %v549 = vrot.slane %v533, %v548
      %v551 = vunpack.c.l.s4 1966171168
      %v552 = vunpack.c.0.s8 %v551
      %v553 = vlaneseq
      %v554 = vshrl.u32 %v553, 7
      %v555 = vsub.s32 %v552, %v554
      %v556 = vrot.slane %v534, %v555
      %v558 = vunpack.c.l.s4 1966171168
      %v559 = vunpack.c.0.s8 %v558
      %v560 = vlaneseq
      %v561 = vshrl.u32 %v560, 7
      %v562 = vsub.s32 %v559, %v561
      %v563 = vrot.slane %v535, %v562
      %v564 = vcombine.high %v542, %v542
      %v565 = vcombine.high %v549, %v549
      %v566 = vcombine.high %v556, %v556
      %v567 = vcombine.high %v563, %v563
      %v568 = vlaneseq
      %v569 = vshrl.u32 %v568, 7
      %v570 = vsub.s32 0, %v569
      %v571 = vrot.slane %v542, %v570
      %v572 = vlaneseq
      %v573 = vshrl.u32 %v572, 7
      %v574 = vsub.s32 0, %v573
      %v575 = vrot.slane %v556, %v574
      %v576 = vlaneseq
      %v577 = vshrl.u32 %v576, 7
      %v578 = vsub.s32 0, %v577
      %v579 = vrot.slane %v564, %v578
      %v580 = vlaneseq
      %v581 = vshrl.u32 %v580, 7
      %v582 = vsub.s32 0, %v581
      %v583 = vrot.slane %v566, %v582
      %v584 = vlaneseq
      %v585 = vshrl.u32 %v584, 7
      %v586 = vsub.s32 0, %v585
      %v587 = vrot.slane %v549, %v586
      %v588 = vlaneseq
      %v589 = vshrl.u32 %v588, 7
      %v590 = vsub.s32 0, %v589
      %v591 = vrot.slane %v563, %v590
      %v592 = vlaneseq
      %v593 = vshrl.u32 %v592, 7
      %v594 = vsub.s32 0, %v593
      %v595 = vrot.slane %v565, %v594
      %v596 = vlaneseq
      %v597 = vshrl.u32 %v596, 7
      %v598 = vsub.s32 0, %v597
      %v599 = vrot.slane %v567, %v598
      %vm600 = vcmp.eq.s32.totalorder %v290, %v571
      %vm601 = vcmp.eq.s32.totalorder %v291, %v571
      %vm602 = vcmp.eq.s32.totalorder %v290, %v575
      %vm603 = vcmp.eq.s32.totalorder %v291, %v575
      %vm604 = vcmp.eq.s32.totalorder %v290, %v579
      %vm605 = vcmp.eq.s32.totalorder %v291, %v579
      %vm606 = vcmp.eq.s32.totalorder %v290, %v583
      %vm607 = vcmp.eq.s32.totalorder %v291, %v583
      %vm608 = vcmp.eq.s32.totalorder %v290, %v587
      %vm609 = vcmp.eq.s32.totalorder %v291, %v587
      %vm610 = vcmp.eq.s32.totalorder %v290, %v591
      %vm611 = vcmp.eq.s32.totalorder %v291, %v591
      %vm612 = vcmp.eq.s32.totalorder %v290, %v595
      %vm613 = vcmp.eq.s32.totalorder %v291, %v595
      %vm614 = vcmp.eq.s32.totalorder %v290, %v599
      %vm615 = vcmp.eq.s32.totalorder %v291, %v599
      %v616 = vlaneseq
      %v617 = vshrl.u32 %v616, 7
      %v618 = vsub.s32 0, %v617
      %v619 = vrot.slane %v413, %v618
      %v620 = vlaneseq
      %v621 = vshrl.u32 %v620, 7
      %v622 = vsub.s32 0, %v621
      %v623 = vrot.slane %v427, %v622
      %v624 = vlaneseq
      %v625 = vshrl.u32 %v624, 7
      %v626 = vsub.s32 0, %v625
      %v627 = vrot.slane %v435, %v626
      %v628 = vlaneseq
      %v629 = vshrl.u32 %v628, 7
      %v630 = vsub.s32 0, %v629
      %v631 = vrot.slane %v437, %v630
      %v632 = vlaneseq
      %v633 = vshrl.u32 %v632, 7
      %v634 = vsub.s32 0, %v633
      %v635 = vrot.slane %v420, %v634
      %v636 = vlaneseq
      %v637 = vshrl.u32 %v636, 7
      %v638 = vsub.s32 0, %v637
      %v639 = vrot.slane %v434, %v638
      %v640 = vlaneseq
      %v641 = vshrl.u32 %v640, 7
      %v642 = vsub.s32 0, %v641
      %v643 = vrot.slane %v436, %v642
      %v644 = vlaneseq
      %v645 = vshrl.u32 %v644, 7
      %v646 = vsub.s32 0, %v645
      %v647 = vrot.slane %v438, %v646
      %v656 = vsel %vm600, %v619, 0.0
      %v657 = vsel %vm601, %v619, 0.0
      %v658 = vsel %vm602, %v623, 0.0
      %v659 = vsel %vm603, %v623, 0.0
      %v660 = vsel %vm604, %v627, 0.0
      %v661 = vsel %vm605, %v627, 0.0
      %v662 = vsel %vm606, %v631, 0.0
      %v663 = vsel %vm607, %v631, 0.0
      %v664 = vsel %vm608, %v635, 0.0
      %v665 = vsel %vm609, %v635, 0.0
      %v666 = vsel %vm610, %v639, 0.0
      %v667 = vsel %vm611, %v639, 0.0
      %v668 = vsel %vm612, %v643, 0.0
      %v669 = vsel %vm613, %v643, 0.0
      %v670 = vsel %vm614, %v647, 0.0
      %v671 = vsel %vm615, %v647, 0.0
      %v672 = vadd.f32 %v503, %v656
      %v673 = vadd.f32 %v504, %v657
      %v674 = vadd.f32 %v505, %v658
      %v675 = vadd.f32 %v506, %v659
      %v676 = vadd.f32 %v507, %v660
      %v677 = vadd.f32 %v508, %v661
      %v678 = vadd.f32 %v509, %v662
      %v679 = vadd.f32 %v510, %v663
      %v680 = vadd.f32 %v511, %v664
      %v681 = vadd.f32 %v512, %v665
      %v682 = vadd.f32 %v513, %v666
      %v683 = vadd.f32 %v514, %v667
      %v684 = vadd.f32 %v515, %v668
      %v685 = vadd.f32 %v516, %v669
      %v686 = vadd.f32 %v517, %v670
      %v687 = vadd.f32 %v518, %v671
      %v688 = vcombine.high %v285, %v285
      %v690 = vunpack.c.l.s4 1966171168
      %v691 = vunpack.c.0.s8 %v690
      %v692 = vlaneseq
      %v693 = vshrl.u32 %v692, 7
      %v694 = vsub.s32 %v691, %v693
      %v695 = vrot.slane %v285, %v694
      %v697 = vunpack.c.l.s4 1966171168
      %v698 = vunpack.c.0.s8 %v697
      %v699 = vlaneseq
      %v700 = vshrl.u32 %v699, 7
      %v701 = vsub.s32 %v698, %v700
      %v702 = vrot.slane %v688, %v701
      %v703 = vcombine.high %v695, %v695
      %v704 = vcombine.high %v702, %v702
      %v706 = vunpack.c.l.s4 1966171168
      %v707 = vunpack.c.0.s8 %v706
      %v708 = vlaneseq
      %v709 = vshrl.u32 %v708, 7
      %v710 = vsub.s32 %v707, %v709
      %v711 = vrot.slane %v695, %v710
      %v713 = vunpack.c.l.s4 1966171168
      %v714 = vunpack.c.0.s8 %v713
      %v715 = vlaneseq
      %v716 = vshrl.u32 %v715, 7
      %v717 = vsub.s32 %v714, %v716
      %v718 = vrot.slane %v702, %v717
      %v720 = vunpack.c.l.s4 1966171168
      %v721 = vunpack.c.0.s8 %v720
      %v722 = vlaneseq
      %v723 = vshrl.u32 %v722, 7
      %v724 = vsub.s32 %v721, %v723
      %v725 = vrot.slane %v703, %v724
      %v727 = vunpack.c.l.s4 1966171168
      %v728 = vunpack.c.0.s8 %v727
      %v729 = vlaneseq
      %v730 = vshrl.u32 %v729, 7
      %v731 = vsub.s32 %v728, %v730
      %v732 = vrot.slane %v704, %v731
      %v733 = vcombine.high %v711, %v711
      %v734 = vcombine.high %v718, %v718
      %v735 = vcombine.high %v725, %v725
      %v736 = vcombine.high %v732, %v732
      %v737 = vlaneseq
      %v738 = vshrl.u32 %v737, 7
      %v739 = vsub.s32 0, %v738
      %v740 = vrot.slane %v711, %v739
      %v741 = vlaneseq
      %v742 = vshrl.u32 %v741, 7
      %v743 = vsub.s32 0, %v742
      %v744 = vrot.slane %v725, %v743
      %v745 = vlaneseq
      %v746 = vshrl.u32 %v745, 7
      %v747 = vsub.s32 0, %v746
      %v748 = vrot.slane %v733, %v747
      %v749 = vlaneseq
      %v750 = vshrl.u32 %v749, 7
      %v751 = vsub.s32 0, %v750
      %v752 = vrot.slane %v735, %v751
      %v753 = vlaneseq
      %v754 = vshrl.u32 %v753, 7
      %v755 = vsub.s32 0, %v754
      %v756 = vrot.slane %v718, %v755
      %v757 = vlaneseq
      %v758 = vshrl.u32 %v757, 7
      %v759 = vsub.s32 0, %v758
      %v760 = vrot.slane %v732, %v759
      %v761 = vlaneseq
      %v762 = vshrl.u32 %v761, 7
      %v763 = vsub.s32 0, %v762
      %v764 = vrot.slane %v734, %v763
      %v765 = vlaneseq
      %v766 = vshrl.u32 %v765, 7
      %v767 = vsub.s32 0, %v766
      %v768 = vrot.slane %v736, %v767
      %vm769 = vcmp.eq.s32.totalorder %v290, %v740
      %vm770 = vcmp.eq.s32.totalorder %v291, %v740
      %vm771 = vcmp.eq.s32.totalorder %v290, %v744
      %vm772 = vcmp.eq.s32.totalorder %v291, %v744
      %vm773 = vcmp.eq.s32.totalorder %v290, %v748
      %vm774 = vcmp.eq.s32.totalorder %v291, %v748
      %vm775 = vcmp.eq.s32.totalorder %v290, %v752
      %vm776 = vcmp.eq.s32.totalorder %v291, %v752
      %vm777 = vcmp.eq.s32.totalorder %v290, %v756
      %vm778 = vcmp.eq.s32.totalorder %v291, %v756
      %vm779 = vcmp.eq.s32.totalorder %v290, %v760
      %vm780 = vcmp.eq.s32.totalorder %v291, %v760
      %vm781 = vcmp.eq.s32.totalorder %v290, %v764
      %vm782 = vcmp.eq.s32.totalorder %v291, %v764
      %vm783 = vcmp.eq.s32.totalorder %v290, %v768
      %vm784 = vcmp.eq.s32.totalorder %v291, %v768
      %v786 = vcombine.high %v279, %v279
      %v788 = vunpack.c.l.s4 1966171168
      %v789 = vunpack.c.0.s8 %v788
      %v790 = vlaneseq
      %v791 = vshrl.u32 %v790, 7
      %v792 = vsub.s32 %v789, %v791
      %v793 = vrot.slane %v279, %v792
      %v795 = vunpack.c.l.s4 1966171168
      %v796 = vunpack.c.0.s8 %v795
      %v797 = vlaneseq
      %v798 = vshrl.u32 %v797, 7
      %v799 = vsub.s32 %v796, %v798
      %v800 = vrot.slane %v786, %v799
      %v801 = vcombine.high %v793, %v793
      %v802 = vcombine.high %v800, %v800
      %v804 = vunpack.c.l.s4 1966171168
      %v805 = vunpack.c.0.s8 %v804
      %v806 = vlaneseq
      %v807 = vshrl.u32 %v806, 7
      %v808 = vsub.s32 %v805, %v807
      %v809 = vrot.slane %v793, %v808
      %v811 = vunpack.c.l.s4 1966171168
      %v812 = vunpack.c.0.s8 %v811
      %v813 = vlaneseq
      %v814 = vshrl.u32 %v813, 7
      %v815 = vsub.s32 %v812, %v814
      %v816 = vrot.slane %v800, %v815
      %v818 = vunpack.c.l.s4 1966171168
      %v819 = vunpack.c.0.s8 %v818
      %v820 = vlaneseq
      %v821 = vshrl.u32 %v820, 7
      %v822 = vsub.s32 %v819, %v821
      %v823 = vrot.slane %v801, %v822
      %v825 = vunpack.c.l.s4 1966171168
      %v826 = vunpack.c.0.s8 %v825
      %v827 = vlaneseq
      %v828 = vshrl.u32 %v827, 7
      %v829 = vsub.s32 %v826, %v828
      %v830 = vrot.slane %v802, %v829
      %v831 = vcombine.high %v809, %v809
      %v832 = vcombine.high %v816, %v816
      %v833 = vcombine.high %v823, %v823
      %v834 = vcombine.high %v830, %v830
      %v843 = vsub.f32 1.0, %v809
      %v844 = vsub.f32 1.0, %v823
      %v845 = vsub.f32 1.0, %v831
      %v846 = vsub.f32 1.0, %v833
      %v847 = vsub.f32 1.0, %v816
      %v848 = vsub.f32 1.0, %v830
      %v849 = vsub.f32 1.0, %v832
      %v850 = vsub.f32 1.0, %v834
      %v859 = vlaneseq
      %v860 = vshrl.u32 %v859, 7
      %v861 = vsub.s32 0, %v860
      %v862 = vrot.slane %v843, %v861
      %v863 = vlaneseq
      %v864 = vshrl.u32 %v863, 7
      %v865 = vsub.s32 0, %v864
      %v866 = vrot.slane %v844, %v865
      %v867 = vlaneseq
      %v868 = vshrl.u32 %v867, 7
      %v869 = vsub.s32 0, %v868
      %v870 = vrot.slane %v845, %v869
      %v871 = vlaneseq
      %v872 = vshrl.u32 %v871, 7
      %v873 = vsub.s32 0, %v872
      %v874 = vrot.slane %v846, %v873
      %v875 = vlaneseq
      %v876 = vshrl.u32 %v875, 7
      %v877 = vsub.s32 0, %v876
      %v878 = vrot.slane %v847, %v877
      %v879 = vlaneseq
      %v880 = vshrl.u32 %v879, 7
      %v881 = vsub.s32 0, %v880
      %v882 = vrot.slane %v848, %v881
      %v883 = vlaneseq
      %v884 = vshrl.u32 %v883, 7
      %v885 = vsub.s32 0, %v884
      %v886 = vrot.slane %v849, %v885
      %v887 = vlaneseq
      %v888 = vshrl.u32 %v887, 7
      %v889 = vsub.s32 0, %v888
      %v890 = vrot.slane %v850, %v889
      %v899 = vsel %vm769, %v862, 0.0
      %v900 = vsel %vm770, %v862, 0.0
      %v901 = vsel %vm771, %v866, 0.0
      %v902 = vsel %vm772, %v866, 0.0
      %v903 = vsel %vm773, %v870, 0.0
      %v904 = vsel %vm774, %v870, 0.0
      %v905 = vsel %vm775, %v874, 0.0
      %v906 = vsel %vm776, %v874, 0.0
      %v907 = vsel %vm777, %v878, 0.0
      %v908 = vsel %vm778, %v878, 0.0
      %v909 = vsel %vm779, %v882, 0.0
      %v910 = vsel %vm780, %v882, 0.0
      %v911 = vsel %vm781, %v886, 0.0
      %v912 = vsel %vm782, %v886, 0.0
      %v913 = vsel %vm783, %v890, 0.0
      %v914 = vsel %vm784, %v890, 0.0
      %v915 = vcombine.high %v288, %v288
      %v917 = vunpack.c.l.s4 1966171168
      %v918 = vunpack.c.0.s8 %v917
      %v919 = vlaneseq
      %v920 = vshrl.u32 %v919, 7
      %v921 = vsub.s32 %v918, %v920
      %v922 = vrot.slane %v288, %v921
      %v924 = vunpack.c.l.s4 1966171168
      %v925 = vunpack.c.0.s8 %v924
      %v926 = vlaneseq
      %v927 = vshrl.u32 %v926, 7
      %v928 = vsub.s32 %v925, %v927
      %v929 = vrot.slane %v915, %v928
      %v930 = vcombine.high %v922, %v922
      %v931 = vcombine.high %v929, %v929
      %v933 = vunpack.c.l.s4 1966171168
      %v934 = vunpack.c.0.s8 %v933
      %v935 = vlaneseq
      %v936 = vshrl.u32 %v935, 7
      %v937 = vsub.s32 %v934, %v936
      %v938 = vrot.slane %v922, %v937
      %v940 = vunpack.c.l.s4 1966171168
      %v941 = vunpack.c.0.s8 %v940
      %v942 = vlaneseq
      %v943 = vshrl.u32 %v942, 7
      %v944 = vsub.s32 %v941, %v943
      %v945 = vrot.slane %v929, %v944
      %v947 = vunpack.c.l.s4 1966171168
      %v948 = vunpack.c.0.s8 %v947
      %v949 = vlaneseq
      %v950 = vshrl.u32 %v949, 7
      %v951 = vsub.s32 %v948, %v950
      %v952 = vrot.slane %v930, %v951
      %v954 = vunpack.c.l.s4 1966171168
      %v955 = vunpack.c.0.s8 %v954
      %v956 = vlaneseq
      %v957 = vshrl.u32 %v956, 7
      %v958 = vsub.s32 %v955, %v957
      %v959 = vrot.slane %v931, %v958
      %v960 = vcombine.high %v938, %v938
      %v961 = vcombine.high %v945, %v945
      %v962 = vcombine.high %v952, %v952
      %v963 = vcombine.high %v959, %v959
      %v964 = vlaneseq
      %v965 = vshrl.u32 %v964, 7
      %v966 = vsub.s32 0, %v965
      %v967 = vrot.slane %v938, %v966
      %v968 = vlaneseq
      %v969 = vshrl.u32 %v968, 7
      %v970 = vsub.s32 0, %v969
      %v971 = vrot.slane %v952, %v970
      %v972 = vlaneseq
      %v973 = vshrl.u32 %v972, 7
      %v974 = vsub.s32 0, %v973
      %v975 = vrot.slane %v960, %v974
      %v976 = vlaneseq
      %v977 = vshrl.u32 %v976, 7
      %v978 = vsub.s32 0, %v977
      %v979 = vrot.slane %v962, %v978
      %v980 = vlaneseq
      %v981 = vshrl.u32 %v980, 7
      %v982 = vsub.s32 0, %v981
      %v983 = vrot.slane %v945, %v982
      %v984 = vlaneseq
      %v985 = vshrl.u32 %v984, 7
      %v986 = vsub.s32 0, %v985
      %v987 = vrot.slane %v959, %v986
      %v988 = vlaneseq
      %v989 = vshrl.u32 %v988, 7
      %v990 = vsub.s32 0, %v989
      %v991 = vrot.slane %v961, %v990
      %v992 = vlaneseq
      %v993 = vshrl.u32 %v992, 7
      %v994 = vsub.s32 0, %v993
      %v995 = vrot.slane %v963, %v994
      %vm996 = vcmp.eq.s32.totalorder %v290, %v967
      %vm997 = vcmp.eq.s32.totalorder %v291, %v967
      %vm998 = vcmp.eq.s32.totalorder %v290, %v971
      %vm999 = vcmp.eq.s32.totalorder %v291, %v971
      %vm1000 = vcmp.eq.s32.totalorder %v290, %v975
      %vm1001 = vcmp.eq.s32.totalorder %v291, %v975
      %vm1002 = vcmp.eq.s32.totalorder %v290, %v979
      %vm1003 = vcmp.eq.s32.totalorder %v291, %v979
      %vm1004 = vcmp.eq.s32.totalorder %v290, %v983
      %vm1005 = vcmp.eq.s32.totalorder %v291, %v983
      %vm1006 = vcmp.eq.s32.totalorder %v290, %v987
      %vm1007 = vcmp.eq.s32.totalorder %v291, %v987
      %vm1008 = vcmp.eq.s32.totalorder %v290, %v991
      %vm1009 = vcmp.eq.s32.totalorder %v291, %v991
      %vm1010 = vcmp.eq.s32.totalorder %v290, %v995
      %vm1011 = vcmp.eq.s32.totalorder %v291, %v995
      %v1012 = vlaneseq
      %v1013 = vshrl.u32 %v1012, 7
      %v1014 = vsub.s32 0, %v1013
      %v1015 = vrot.slane %v809, %v1014
      %v1016 = vlaneseq
      %v1017 = vshrl.u32 %v1016, 7
      %v1018 = vsub.s32 0, %v1017
      %v1019 = vrot.slane %v823, %v1018
      %v1020 = vlaneseq
      %v1021 = vshrl.u32 %v1020, 7
      %v1022 = vsub.s32 0, %v1021
      %v1023 = vrot.slane %v831, %v1022
      %v1024 = vlaneseq
      %v1025 = vshrl.u32 %v1024, 7
      %v1026 = vsub.s32 0, %v1025
      %v1027 = vrot.slane %v833, %v1026
      %v1028 = vlaneseq
      %v1029 = vshrl.u32 %v1028, 7
      %v1030 = vsub.s32 0, %v1029
      %v1031 = vrot.slane %v816, %v1030
      %v1032 = vlaneseq
      %v1033 = vshrl.u32 %v1032, 7
      %v1034 = vsub.s32 0, %v1033
      %v1035 = vrot.slane %v830, %v1034
      %v1036 = vlaneseq
      %v1037 = vshrl.u32 %v1036, 7
      %v1038 = vsub.s32 0, %v1037
      %v1039 = vrot.slane %v832, %v1038
      %v1040 = vlaneseq
      %v1041 = vshrl.u32 %v1040, 7
      %v1042 = vsub.s32 0, %v1041
      %v1043 = vrot.slane %v834, %v1042
      %v1052 = vsel %vm996, %v1015, 0.0
      %v1053 = vsel %vm997, %v1015, 0.0
      %v1054 = vsel %vm998, %v1019, 0.0
      %v1055 = vsel %vm999, %v1019, 0.0
      %v1056 = vsel %vm1000, %v1023, 0.0
      %v1057 = vsel %vm1001, %v1023, 0.0
      %v1058 = vsel %vm1002, %v1027, 0.0
      %v1059 = vsel %vm1003, %v1027, 0.0
      %v1060 = vsel %vm1004, %v1031, 0.0
      %v1061 = vsel %vm1005, %v1031, 0.0
      %v1062 = vsel %vm1006, %v1035, 0.0
      %v1063 = vsel %vm1007, %v1035, 0.0
      %v1064 = vsel %vm1008, %v1039, 0.0
      %v1065 = vsel %vm1009, %v1039, 0.0
      %v1066 = vsel %vm1010, %v1043, 0.0
      %v1067 = vsel %vm1011, %v1043, 0.0
      %v1068 = vadd.f32 %v899, %v1052
      %v1069 = vadd.f32 %v900, %v1053
      %v1070 = vadd.f32 %v901, %v1054
      %v1071 = vadd.f32 %v902, %v1055
      %v1072 = vadd.f32 %v903, %v1056
      %v1073 = vadd.f32 %v904, %v1057
      %v1074 = vadd.f32 %v905, %v1058
      %v1075 = vadd.f32 %v906, %v1059
      %v1076 = vadd.f32 %v907, %v1060
      %v1077 = vadd.f32 %v908, %v1061
      %v1078 = vadd.f32 %v909, %v1062
      %v1079 = vadd.f32 %v910, %v1063
      %v1080 = vadd.f32 %v911, %v1064
      %v1081 = vadd.f32 %v912, %v1065
      %v1082 = vadd.f32 %v913, %v1066
      %v1083 = vadd.f32 %v914, %v1067
      %v1084 = vld [vmem:[%s232] sm:$0xff]
      %v1085 = vld [vmem:[%s232 + $0x8] sm:$0xff]
      %v1086 = vld [vmem:[%s232 + $0x10] sm:$0xff]
      %v1087 = vld [vmem:[%s232 + $0x18] sm:$0xff]
      %v1088 = vld [vmem:[%s232 + $0x20] sm:$0xff]
      %v1089 = vld [vmem:[%s232 + $0x28] sm:$0xff]
      %v1090 = vld [vmem:[%s232 + $0x30] sm:$0xff]
      %v1091 = vld [vmem:[%s232 + $0x38] sm:$0xff]
      %v1092 = vld [vmem:[%s232 + $0x40] sm:$0xff]
      %v1093 = vld [vmem:[%s232 + $0x48] sm:$0xff]
      %v1094 = vld [vmem:[%s232 + $0x50] sm:$0xff]
      %v1095 = vld [vmem:[%s232 + $0x58] sm:$0xff]
      %v1096 = vld [vmem:[%s232 + $0x60] sm:$0xff]
      %v1097 = vld [vmem:[%s232 + $0x68] sm:$0xff]
      %v1098 = vld [vmem:[%s232 + $0x70] sm:$0xff]
      %v1099 = vld [vmem:[%s232 + $0x78] sm:$0xff]
      %vm1100 = vcmask 130048
      %v1102 = vsel %vm1100, %v1084, 0
      %v1105 = vsel %vm1100, %v1085, 0
      %1107 = vmatprep.subr.mxu0 0.0
      %1108 = vmatpush1.msra.mxu0 0.0
      %1109 = vmatprep.subr.mxu0 0.0
      %1110 = vmatpush1.msra.mxu0 0.0
      %1111 = vmatprep.subr.mxu0 0.0
      %1112 = vmatpush1.msra.mxu0 0.0
      %1113 = vmatprep.subr.mxu0 0.0
      %1114 = vmatpush1.msra.mxu0 0.0
      %1115 = vmatprep.subr.mxu0 0.0
      %1116 = vmatpush1.msra.mxu0 0.0
      %1117 = vmatprep.subr.mxu0 0.0
      %1118 = vmatpush1.msra.mxu0 0.0
      %1119 = vmatprep.subr.mxu0 0.0
      %1120 = vmatpush1.msra.mxu0 0.0
      %1121 = vmatprep.subr.mxu0 0.0
      %1122 = vmatpush1.msra.mxu0 0.0
      %1123 = vmatprep.subr.mxu0 0.0
      %1124 = vmatpush1.msra.mxu0 0.0
      %1125 = vmatprep.subr.mxu0 0.0
      %1126 = vmatpush1.msra.mxu0 0.0
      %1127 = vmatprep.subr.mxu0 0.0
      %1128 = vmatpush1.msra.mxu0 0.0
      %1129 = vmatprep.subr.mxu0 0.0
      %1130 = vmatpush1.msra.mxu0 0.0
      %1131 = vmatprep.subr.mxu0 0.0
      %1132 = vmatpush1.msra.mxu0 0.0
      %1133 = vmatprep.subr.mxu0 0.0
      %1134 = vmatpush1.msra.mxu0 0.0
      %1135 = vmatprep.subr.mxu0 0.0
      %1136 = vmatpush1.msra.mxu0 %v673
      %1137 = vmatprep.subr.mxu0 0.0
      %1138 = vmatpush1.msra.mxu0 %v672
      %1139 = vmatprep.subr.mxu0 0.0
      %1140 = vmatpush2.msra.mxu0 0.0
      %1141 = vmatprep.subr.mxu0 0.0
      %1142 = vmatpush2.msra.mxu0 0.0
      %1143 = vmatprep.subr.mxu0 0.0
      %1144 = vmatpush2.msra.mxu0 0.0
      %1145 = vmatprep.subr.mxu0 0.0
      %1146 = vmatpush2.msra.mxu0 0.0
      %1147 = vmatprep.subr.mxu0 0.0
      %1148 = vmatpush2.msra.mxu0 0.0
      %1149 = vmatprep.subr.mxu0 0.0
      %1150 = vmatpush2.msra.mxu0 0.0
      %1151 = vmatprep.subr.mxu0 0.0
      %1152 = vmatpush2.msra.mxu0 0.0
      %1153 = vmatprep.subr.mxu0 0.0
      %1154 = vmatpush2.msra.mxu0 0.0
      %1155 = vmatprep.subr.mxu0 0.0
      %1156 = vmatpush2.msra.mxu0 0.0
      %1157 = vmatprep.subr.mxu0 0.0
      %1158 = vmatpush2.msra.mxu0 0.0
      %1159 = vmatprep.subr.mxu0 0.0
      %1160 = vmatpush2.msra.mxu0 0.0
      %1161 = vmatprep.subr.mxu0 0.0
      %1162 = vmatpush2.msra.mxu0 0.0
      %1163 = vmatprep.subr.mxu0 0.0
      %1164 = vmatpush2.msra.mxu0 0.0
      %1165 = vmatprep.subr.mxu0 0.0
      %1166 = vmatpush2.msra.mxu0 0.0
      %1167 = vmatprep.subr.mxu0 0.0
      %1168 = vmatpush2.msra.mxu0 0.0
      %1169 = vmatprep.subr.mxu0 0.0
      %1170 = vmatpush2.msra.mxu0 0.0
      %1171 = vmatprep.mubr.f32.mxu0 0.0
      %1172 = vmatmul.mubr.f32.gmra.mxu0 %v1102
      %v1173 = vpop.f32.mrf.mxu0
      %v1174 = vadd.f32 0.0, %v1173
      %v1175 = vpop.f32.mrf.mxu0
      %1176 = vmatprep.mubr.f32.mxu0 0.0
      %1177 = vmatmul.mubr.f32.gmra.mxu0 %v1105
      %v1178 = vpop.f32.mrf.mxu0
      %v1179 = vadd.f32 0.0, %v1178
      %v1180 = vpop.f32.mrf.mxu0
      %1181 = vdwg.mxu0
      %v1183 = vsel %vm1100, %v1086, 0
      %v1186 = vsel %vm1100, %v1087, 0
      %1188 = vmatprep.subr.mxu0 0.0
      %1189 = vmatpush1.msra.mxu0 0.0
      %1190 = vmatprep.subr.mxu0 0.0
      %1191 = vmatpush1.msra.mxu0 0.0
      %1192 = vmatprep.subr.mxu0 0.0
      %1193 = vmatpush1.msra.mxu0 0.0
      %1194 = vmatprep.subr.mxu0 0.0
      %1195 = vmatpush1.msra.mxu0 0.0
      %1196 = vmatprep.subr.mxu0 0.0
      %1197 = vmatpush1.msra.mxu0 0.0
      %1198 = vmatprep.subr.mxu0 0.0
      %1199 = vmatpush1.msra.mxu0 0.0
      %1200 = vmatprep.subr.mxu0 0.0
      %1201 = vmatpush1.msra.mxu0 0.0
      %1202 = vmatprep.subr.mxu0 0.0
      %1203 = vmatpush1.msra.mxu0 0.0
      %1204 = vmatprep.subr.mxu0 0.0
      %1205 = vmatpush1.msra.mxu0 0.0
      %1206 = vmatprep.subr.mxu0 0.0
      %1207 = vmatpush1.msra.mxu0 0.0
      %1208 = vmatprep.subr.mxu0 0.0
      %1209 = vmatpush1.msra.mxu0 0.0
      %1210 = vmatprep.subr.mxu0 0.0
      %1211 = vmatpush1.msra.mxu0 0.0
      %1212 = vmatprep.subr.mxu0 0.0
      %1213 = vmatpush1.msra.mxu0 0.0
      %1214 = vmatprep.subr.mxu0 0.0
      %1215 = vmatpush1.msra.mxu0 0.0
      %1216 = vmatprep.subr.mxu0 0.0
      %1217 = vmatpush1.msra.mxu0 %v675
      %1218 = vmatprep.subr.mxu0 0.0
      %1219 = vmatpush1.msra.mxu0 %v674
      %1220 = vmatprep.subr.mxu0 0.0
      %1221 = vmatpush2.msra.mxu0 0.0
      %1222 = vmatprep.subr.mxu0 0.0
      %1223 = vmatpush2.msra.mxu0 0.0
      %1224 = vmatprep.subr.mxu0 0.0
      %1225 = vmatpush2.msra.mxu0 0.0
      %1226 = vmatprep.subr.mxu0 0.0
      %1227 = vmatpush2.msra.mxu0 0.0
      %1228 = vmatprep.subr.mxu0 0.0
      %1229 = vmatpush2.msra.mxu0 0.0
      %1230 = vmatprep.subr.mxu0 0.0
      %1231 = vmatpush2.msra.mxu0 0.0
      %1232 = vmatprep.subr.mxu0 0.0
      %1233 = vmatpush2.msra.mxu0 0.0
      %1234 = vmatprep.subr.mxu0 0.0
      %1235 = vmatpush2.msra.mxu0 0.0
      %1236 = vmatprep.subr.mxu0 0.0
      %1237 = vmatpush2.msra.mxu0 0.0
      %1238 = vmatprep.subr.mxu0 0.0
      %1239 = vmatpush2.msra.mxu0 0.0
      %1240 = vmatprep.subr.mxu0 0.0
      %1241 = vmatpush2.msra.mxu0 0.0
      %1242 = vmatprep.subr.mxu0 0.0
      %1243 = vmatpush2.msra.mxu0 0.0
      %1244 = vmatprep.subr.mxu0 0.0
      %1245 = vmatpush2.msra.mxu0 0.0
      %1246 = vmatprep.subr.mxu0 0.0
      %1247 = vmatpush2.msra.mxu0 0.0
      %1248 = vmatprep.subr.mxu0 0.0
      %1249 = vmatpush2.msra.mxu0 0.0
      %1250 = vmatprep.subr.mxu0 0.0
      %1251 = vmatpush2.msra.mxu0 0.0
      %1252 = vmatprep.mubr.f32.mxu0 0.0
      %1253 = vmatmul.mubr.f32.gmra.mxu0 %v1183
      %v1254 = vpop.f32.mrf.mxu0
      %v1255 = vadd.f32 0.0, %v1254
      %v1256 = vpop.f32.mrf.mxu0
      %1257 = vmatprep.mubr.f32.mxu0 0.0
      %1258 = vmatmul.mubr.f32.gmra.mxu0 %v1186
      %v1259 = vpop.f32.mrf.mxu0
      %v1260 = vadd.f32 0.0, %v1259
      %v1261 = vpop.f32.mrf.mxu0
      %1262 = vdwg.mxu0
      %v1264 = vsel %vm1100, %v1088, 0
      %v1267 = vsel %vm1100, %v1089, 0
      %1269 = vmatprep.subr.mxu0 0.0
      %1270 = vmatpush1.msra.mxu0 0.0
      %1271 = vmatprep.subr.mxu0 0.0
      %1272 = vmatpush1.msra.mxu0 0.0
      %1273 = vmatprep.subr.mxu0 0.0
      %1274 = vmatpush1.msra.mxu0 0.0
      %1275 = vmatprep.subr.mxu0 0.0
      %1276 = vmatpush1.msra.mxu0 0.0
      %1277 = vmatprep.subr.mxu0 0.0
      %1278 = vmatpush1.msra.mxu0 0.0
      %1279 = vmatprep.subr.mxu0 0.0
      %1280 = vmatpush1.msra.mxu0 0.0
      %1281 = vmatprep.subr.mxu0 0.0
      %1282 = vmatpush1.msra.mxu0 0.0
      %1283 = vmatprep.subr.mxu0 0.0
      %1284 = vmatpush1.msra.mxu0 0.0
      %1285 = vmatprep.subr.mxu0 0.0
      %1286 = vmatpush1.msra.mxu0 0.0
      %1287 = vmatprep.subr.mxu0 0.0
      %1288 = vmatpush1.msra.mxu0 0.0
      %1289 = vmatprep.subr.mxu0 0.0
      %1290 = vmatpush1.msra.mxu0 0.0
      %1291 = vmatprep.subr.mxu0 0.0
      %1292 = vmatpush1.msra.mxu0 0.0
      %1293 = vmatprep.subr.mxu0 0.0
      %1294 = vmatpush1.msra.mxu0 0.0
      %1295 = vmatprep.subr.mxu0 0.0
      %1296 = vmatpush1.msra.mxu0 0.0
      %1297 = vmatprep.subr.mxu0 0.0
      %1298 = vmatpush1.msra.mxu0 %v677
      %1299 = vmatprep.subr.mxu0 0.0
      %1300 = vmatpush1.msra.mxu0 %v676
      %1301 = vmatprep.subr.mxu0 0.0
      %1302 = vmatpush2.msra.mxu0 0.0
      %1303 = vmatprep.subr.mxu0 0.0
      %1304 = vmatpush2.msra.mxu0 0.0
      %1305 = vmatprep.subr.mxu0 0.0
      %1306 = vmatpush2.msra.mxu0 0.0
      %1307 = vmatprep.subr.mxu0 0.0
      %1308 = vmatpush2.msra.mxu0 0.0
      %1309 = vmatprep.subr.mxu0 0.0
      %1310 = vmatpush2.msra.mxu0 0.0
      %1311 = vmatprep.subr.mxu0 0.0
      %1312 = vmatpush2.msra.mxu0 0.0
      %1313 = vmatprep.subr.mxu0 0.0
      %1314 = vmatpush2.msra.mxu0 0.0
      %1315 = vmatprep.subr.mxu0 0.0
      %1316 = vmatpush2.msra.mxu0 0.0
      %1317 = vmatprep.subr.mxu0 0.0
      %1318 = vmatpush2.msra.mxu0 0.0
      %1319 = vmatprep.subr.mxu0 0.0
      %1320 = vmatpush2.msra.mxu0 0.0
      %1321 = vmatprep.subr.mxu0 0.0
      %1322 = vmatpush2.msra.mxu0 0.0
      %1323 = vmatprep.subr.mxu0 0.0
      %1324 = vmatpush2.msra.mxu0 0.0
      %1325 = vmatprep.subr.mxu0 0.0
      %1326 = vmatpush2.msra.mxu0 0.0
      %1327 = vmatprep.subr.mxu0 0.0
      %1328 = vmatpush2.msra.mxu0 0.0
      %1329 = vmatprep.subr.mxu0 0.0
      %1330 = vmatpush2.msra.mxu0 0.0
      %1331 = vmatprep.subr.mxu0 0.0
      %1332 = vmatpush2.msra.mxu0 0.0
      %1333 = vmatprep.mubr.f32.mxu0 0.0
      %1334 = vmatmul.mubr.f32.gmra.mxu0 %v1264
      %v1335 = vpop.f32.mrf.mxu0
      %v1336 = vadd.f32 0.0, %v1335
      %v1337 = vpop.f32.mrf.mxu0
      %1338 = vmatprep.mubr.f32.mxu0 0.0
      %1339 = vmatmul.mubr.f32.gmra.mxu0 %v1267
      %v1340 = vpop.f32.mrf.mxu0
      %v1341 = vadd.f32 0.0, %v1340
      %v1342 = vpop.f32.mrf.mxu0
      %1343 = vdwg.mxu0
      %v1345 = vsel %vm1100, %v1090, 0
      %v1348 = vsel %vm1100, %v1091, 0
      %1350 = vmatprep.subr.mxu0 0.0
      %1351 = vmatpush1.msra.mxu0 0.0
      %1352 = vmatprep.subr.mxu0 0.0
      %1353 = vmatpush1.msra.mxu0 0.0
      %1354 = vmatprep.subr.mxu0 0.0
      %1355 = vmatpush1.msra.mxu0 0.0
      %1356 = vmatprep.subr.mxu0 0.0
      %1357 = vmatpush1.msra.mxu0 0.0
      %1358 = vmatprep.subr.mxu0 0.0
      %1359 = vmatpush1.msra.mxu0 0.0
      %1360 = vmatprep.subr.mxu0 0.0
      %1361 = vmatpush1.msra.mxu0 0.0
      %1362 = vmatprep.subr.mxu0 0.0
      %1363 = vmatpush1.msra.mxu0 0.0
      %1364 = vmatprep.subr.mxu0 0.0
      %1365 = vmatpush1.msra.mxu0 0.0
      %1366 = vmatprep.subr.mxu0 0.0
      %1367 = vmatpush1.msra.mxu0 0.0
      %1368 = vmatprep.subr.mxu0 0.0
      %1369 = vmatpush1.msra.mxu0 0.0
      %1370 = vmatprep.subr.mxu0 0.0
      %1371 = vmatpush1.msra.mxu0 0.0
      %1372 = vmatprep.subr.mxu0 0.0
      %1373 = vmatpush1.msra.mxu0 0.0
      %1374 = vmatprep.subr.mxu0 0.0
      %1375 = vmatpush1.msra.mxu0 0.0
      %1376 = vmatprep.subr.mxu0 0.0
      %1377 = vmatpush1.msra.mxu0 0.0
      %1378 = vmatprep.subr.mxu0 0.0
      %1379 = vmatpush1.msra.mxu0 %v679
      %1380 = vmatprep.subr.mxu0 0.0
      %1381 = vmatpush1.msra.mxu0 %v678
      %1382 = vmatprep.subr.mxu0 0.0
      %1383 = vmatpush2.msra.mxu0 0.0
      %1384 = vmatprep.subr.mxu0 0.0
      %1385 = vmatpush2.msra.mxu0 0.0
      %1386 = vmatprep.subr.mxu0 0.0
      %1387 = vmatpush2.msra.mxu0 0.0
      %1388 = vmatprep.subr.mxu0 0.0
      %1389 = vmatpush2.msra.mxu0 0.0
      %1390 = vmatprep.subr.mxu0 0.0
      %1391 = vmatpush2.msra.mxu0 0.0
      %1392 = vmatprep.subr.mxu0 0.0
      %1393 = vmatpush2.msra.mxu0 0.0
      %1394 = vmatprep.subr.mxu0 0.0
      %1395 = vmatpush2.msra.mxu0 0.0
      %1396 = vmatprep.subr.mxu0 0.0
      %1397 = vmatpush2.msra.mxu0 0.0
      %1398 = vmatprep.subr.mxu0 0.0
      %1399 = vmatpush2.msra.mxu0 0.0
      %1400 = vmatprep.subr.mxu0 0.0
      %1401 = vmatpush2.msra.mxu0 0.0
      %1402 = vmatprep.subr.mxu0 0.0
      %1403 = vmatpush2.msra.mxu0 0.0
      %1404 = vmatprep.subr.mxu0 0.0
      %1405 = vmatpush2.msra.mxu0 0.0
      %1406 = vmatprep.subr.mxu0 0.0
      %1407 = vmatpush2.msra.mxu0 0.0
      %1408 = vmatprep.subr.mxu0 0.0
      %1409 = vmatpush2.msra.mxu0 0.0
      %1410 = vmatprep.subr.mxu0 0.0
      %1411 = vmatpush2.msra.mxu0 0.0
      %1412 = vmatprep.subr.mxu0 0.0
      %1413 = vmatpush2.msra.mxu0 0.0
      %1414 = vmatprep.mubr.f32.mxu0 0.0
      %1415 = vmatmul.mubr.f32.gmra.mxu0 %v1345
      %v1416 = vpop.f32.mrf.mxu0
      %v1417 = vadd.f32 0.0, %v1416
      %v1418 = vpop.f32.mrf.mxu0
      %1419 = vmatprep.mubr.f32.mxu0 0.0
      %1420 = vmatmul.mubr.f32.gmra.mxu0 %v1348
      %v1421 = vpop.f32.mrf.mxu0
      %v1422 = vadd.f32 0.0, %v1421
      %v1423 = vpop.f32.mrf.mxu0
      %1424 = vdwg.mxu0
      %v1426 = vsel %vm1100, %v1092, 0
      %v1429 = vsel %vm1100, %v1093, 0
      %1431 = vmatprep.subr.mxu0 0.0
      %1432 = vmatpush1.msra.mxu0 0.0
      %1433 = vmatprep.subr.mxu0 0.0
      %1434 = vmatpush1.msra.mxu0 0.0
      %1435 = vmatprep.subr.mxu0 0.0
      %1436 = vmatpush1.msra.mxu0 0.0
      %1437 = vmatprep.subr.mxu0 0.0
      %1438 = vmatpush1.msra.mxu0 0.0
      %1439 = vmatprep.subr.mxu0 0.0
      %1440 = vmatpush1.msra.mxu0 0.0
      %1441 = vmatprep.subr.mxu0 0.0
      %1442 = vmatpush1.msra.mxu0 0.0
      %1443 = vmatprep.subr.mxu0 0.0
      %1444 = vmatpush1.msra.mxu0 0.0
      %1445 = vmatprep.subr.mxu0 0.0
      %1446 = vmatpush1.msra.mxu0 0.0
      %1447 = vmatprep.subr.mxu0 0.0
      %1448 = vmatpush1.msra.mxu0 0.0
      %1449 = vmatprep.subr.mxu0 0.0
      %1450 = vmatpush1.msra.mxu0 0.0
      %1451 = vmatprep.subr.mxu0 0.0
      %1452 = vmatpush1.msra.mxu0 0.0
      %1453 = vmatprep.subr.mxu0 0.0
      %1454 = vmatpush1.msra.mxu0 0.0
      %1455 = vmatprep.subr.mxu0 0.0
      %1456 = vmatpush1.msra.mxu0 0.0
      %1457 = vmatprep.subr.mxu0 0.0
      %1458 = vmatpush1.msra.mxu0 0.0
      %1459 = vmatprep.subr.mxu0 0.0
      %1460 = vmatpush1.msra.mxu0 %v681
      %1461 = vmatprep.subr.mxu0 0.0
      %1462 = vmatpush1.msra.mxu0 %v680
      %1463 = vmatprep.subr.mxu0 0.0
      %1464 = vmatpush2.msra.mxu0 0.0
      %1465 = vmatprep.subr.mxu0 0.0
      %1466 = vmatpush2.msra.mxu0 0.0
      %1467 = vmatprep.subr.mxu0 0.0
      %1468 = vmatpush2.msra.mxu0 0.0
      %1469 = vmatprep.subr.mxu0 0.0
      %1470 = vmatpush2.msra.mxu0 0.0
      %1471 = vmatprep.subr.mxu0 0.0
      %1472 = vmatpush2.msra.mxu0 0.0
      %1473 = vmatprep.subr.mxu0 0.0
      %1474 = vmatpush2.msra.mxu0 0.0
      %1475 = vmatprep.subr.mxu0 0.0
      %1476 = vmatpush2.msra.mxu0 0.0
      %1477 = vmatprep.subr.mxu0 0.0
      %1478 = vmatpush2.msra.mxu0 0.0
      %1479 = vmatprep.subr.mxu0 0.0
      %1480 = vmatpush2.msra.mxu0 0.0
      %1481 = vmatprep.subr.mxu0 0.0
      %1482 = vmatpush2.msra.mxu0 0.0
      %1483 = vmatprep.subr.mxu0 0.0
      %1484 = vmatpush2.msra.mxu0 0.0
      %1485 = vmatprep.subr.mxu0 0.0
      %1486 = vmatpush2.msra.mxu0 0.0
      %1487 = vmatprep.subr.mxu0 0.0
      %1488 = vmatpush2.msra.mxu0 0.0
      %1489 = vmatprep.subr.mxu0 0.0
      %1490 = vmatpush2.msra.mxu0 0.0
      %1491 = vmatprep.subr.mxu0 0.0
      %1492 = vmatpush2.msra.mxu0 0.0
      %1493 = vmatprep.subr.mxu0 0.0
      %1494 = vmatpush2.msra.mxu0 0.0
      %1495 = vmatprep.mubr.f32.mxu0 0.0
      %1496 = vmatmul.mubr.f32.gmra.mxu0 %v1426
      %v1497 = vpop.f32.mrf.mxu0
      %v1498 = vadd.f32 0.0, %v1497
      %v1499 = vpop.f32.mrf.mxu0
      %1500 = vmatprep.mubr.f32.mxu0 0.0
      %1501 = vmatmul.mubr.f32.gmra.mxu0 %v1429
      %v1502 = vpop.f32.mrf.mxu0
      %v1503 = vadd.f32 0.0, %v1502
      %v1504 = vpop.f32.mrf.mxu0
      %1505 = vdwg.mxu0
      %v1507 = vsel %vm1100, %v1094, 0
      %v1510 = vsel %vm1100, %v1095, 0
      %1512 = vmatprep.subr.mxu0 0.0
      %1513 = vmatpush1.msra.mxu0 0.0
      %1514 = vmatprep.subr.mxu0 0.0
      %1515 = vmatpush1.msra.mxu0 0.0
      %1516 = vmatprep.subr.mxu0 0.0
      %1517 = vmatpush1.msra.mxu0 0.0
      %1518 = vmatprep.subr.mxu0 0.0
      %1519 = vmatpush1.msra.mxu0 0.0
      %1520 = vmatprep.subr.mxu0 0.0
      %1521 = vmatpush1.msra.mxu0 0.0
      %1522 = vmatprep.subr.mxu0 0.0
      %1523 = vmatpush1.msra.mxu0 0.0
      %1524 = vmatprep.subr.mxu0 0.0
      %1525 = vmatpush1.msra.mxu0 0.0
      %1526 = vmatprep.subr.mxu0 0.0
      %1527 = vmatpush1.msra.mxu0 0.0
      %1528 = vmatprep.subr.mxu0 0.0
      %1529 = vmatpush1.msra.mxu0 0.0
      %1530 = vmatprep.subr.mxu0 0.0
      %1531 = vmatpush1.msra.mxu0 0.0
      %1532 = vmatprep.subr.mxu0 0.0
      %1533 = vmatpush1.msra.mxu0 0.0
      %1534 = vmatprep.subr.mxu0 0.0
      %1535 = vmatpush1.msra.mxu0 0.0
      %1536 = vmatprep.subr.mxu0 0.0
      %1537 = vmatpush1.msra.mxu0 0.0
      %1538 = vmatprep.subr.mxu0 0.0
      %1539 = vmatpush1.msra.mxu0 0.0
      %1540 = vmatprep.subr.mxu0 0.0
      %1541 = vmatpush1.msra.mxu0 %v683
      %1542 = vmatprep.subr.mxu0 0.0
      %1543 = vmatpush1.msra.mxu0 %v682
      %1544 = vmatprep.subr.mxu0 0.0
      %1545 = vmatpush2.msra.mxu0 0.0
      %1546 = vmatprep.subr.mxu0 0.0
      %1547 = vmatpush2.msra.mxu0 0.0
      %1548 = vmatprep.subr.mxu0 0.0
      %1549 = vmatpush2.msra.mxu0 0.0
      %1550 = vmatprep.subr.mxu0 0.0
      %1551 = vmatpush2.msra.mxu0 0.0
      %1552 = vmatprep.subr.mxu0 0.0
      %1553 = vmatpush2.msra.mxu0 0.0
      %1554 = vmatprep.subr.mxu0 0.0
      %1555 = vmatpush2.msra.mxu0 0.0
      %1556 = vmatprep.subr.mxu0 0.0
      %1557 = vmatpush2.msra.mxu0 0.0
      %1558 = vmatprep.subr.mxu0 0.0
      %1559 = vmatpush2.msra.mxu0 0.0
      %1560 = vmatprep.subr.mxu0 0.0
      %1561 = vmatpush2.msra.mxu0 0.0
      %1562 = vmatprep.subr.mxu0 0.0
      %1563 = vmatpush2.msra.mxu0 0.0
      %1564 = vmatprep.subr.mxu0 0.0
      %1565 = vmatpush2.msra.mxu0 0.0
      %1566 = vmatprep.subr.mxu0 0.0
      %1567 = vmatpush2.msra.mxu0 0.0
      %1568 = vmatprep.subr.mxu0 0.0
      %1569 = vmatpush2.msra.mxu0 0.0
      %1570 = vmatprep.subr.mxu0 0.0
      %1571 = vmatpush2.msra.mxu0 0.0
      %1572 = vmatprep.subr.mxu0 0.0
      %1573 = vmatpush2.msra.mxu0 0.0
      %1574 = vmatprep.subr.mxu0 0.0
      %1575 = vmatpush2.msra.mxu0 0.0
      %1576 = vmatprep.mubr.f32.mxu0 0.0
      %1577 = vmatmul.mubr.f32.gmra.mxu0 %v1507
      %v1578 = vpop.f32.mrf.mxu0
      %v1579 = vadd.f32 0.0, %v1578
      %v1580 = vpop.f32.mrf.mxu0
      %1581 = vmatprep.mubr.f32.mxu0 0.0
      %1582 = vmatmul.mubr.f32.gmra.mxu0 %v1510
      %v1583 = vpop.f32.mrf.mxu0
      %v1584 = vadd.f32 0.0, %v1583
      %v1585 = vpop.f32.mrf.mxu0
      %1586 = vdwg.mxu0
      %v1588 = vsel %vm1100, %v1096, 0
      %v1591 = vsel %vm1100, %v1097, 0
      %1593 = vmatprep.subr.mxu0 0.0
      %1594 = vmatpush1.msra.mxu0 0.0
      %1595 = vmatprep.subr.mxu0 0.0
      %1596 = vmatpush1.msra.mxu0 0.0
      %1597 = vmatprep.subr.mxu0 0.0
      %1598 = vmatpush1.msra.mxu0 0.0
      %1599 = vmatprep.subr.mxu0 0.0
      %1600 = vmatpush1.msra.mxu0 0.0
      %1601 = vmatprep.subr.mxu0 0.0
      %1602 = vmatpush1.msra.mxu0 0.0
      %1603 = vmatprep.subr.mxu0 0.0
      %1604 = vmatpush1.msra.mxu0 0.0
      %1605 = vmatprep.subr.mxu0 0.0
      %1606 = vmatpush1.msra.mxu0 0.0
      %1607 = vmatprep.subr.mxu0 0.0
      %1608 = vmatpush1.msra.mxu0 0.0
      %1609 = vmatprep.subr.mxu0 0.0
      %1610 = vmatpush1.msra.mxu0 0.0
      %1611 = vmatprep.subr.mxu0 0.0
      %1612 = vmatpush1.msra.mxu0 0.0
      %1613 = vmatprep.subr.mxu0 0.0
      %1614 = vmatpush1.msra.mxu0 0.0
      %1615 = vmatprep.subr.mxu0 0.0
      %1616 = vmatpush1.msra.mxu0 0.0
      %1617 = vmatprep.subr.mxu0 0.0
      %1618 = vmatpush1.msra.mxu0 0.0
      %1619 = vmatprep.subr.mxu0 0.0
      %1620 = vmatpush1.msra.mxu0 0.0
      %1621 = vmatprep.subr.mxu0 0.0
      %1622 = vmatpush1.msra.mxu0 %v685
      %1623 = vmatprep.subr.mxu0 0.0
      %1624 = vmatpush1.msra.mxu0 %v684
      %1625 = vmatprep.subr.mxu0 0.0
      %1626 = vmatpush2.msra.mxu0 0.0
      %1627 = vmatprep.subr.mxu0 0.0
      %1628 = vmatpush2.msra.mxu0 0.0
      %1629 = vmatprep.subr.mxu0 0.0
      %1630 = vmatpush2.msra.mxu0 0.0
      %1631 = vmatprep.subr.mxu0 0.0
      %1632 = vmatpush2.msra.mxu0 0.0
      %1633 = vmatprep.subr.mxu0 0.0
      %1634 = vmatpush2.msra.mxu0 0.0
      %1635 = vmatprep.subr.mxu0 0.0
      %1636 = vmatpush2.msra.mxu0 0.0
      %1637 = vmatprep.subr.mxu0 0.0
      %1638 = vmatpush2.msra.mxu0 0.0
      %1639 = vmatprep.subr.mxu0 0.0
      %1640 = vmatpush2.msra.mxu0 0.0
      %1641 = vmatprep.subr.mxu0 0.0
      %1642 = vmatpush2.msra.mxu0 0.0
      %1643 = vmatprep.subr.mxu0 0.0
      %1644 = vmatpush2.msra.mxu0 0.0
      %1645 = vmatprep.subr.mxu0 0.0
      %1646 = vmatpush2.msra.mxu0 0.0
      %1647 = vmatprep.subr.mxu0 0.0
      %1648 = vmatpush2.msra.mxu0 0.0
      %1649 = vmatprep.subr.mxu0 0.0
      %1650 = vmatpush2.msra.mxu0 0.0
      %1651 = vmatprep.subr.mxu0 0.0
      %1652 = vmatpush2.msra.mxu0 0.0
      %1653 = vmatprep.subr.mxu0 0.0
      %1654 = vmatpush2.msra.mxu0 0.0
      %1655 = vmatprep.subr.mxu0 0.0
      %1656 = vmatpush2.msra.mxu0 0.0
      %1657 = vmatprep.mubr.f32.mxu0 0.0
      %1658 = vmatmul.mubr.f32.gmra.mxu0 %v1588
      %v1659 = vpop.f32.mrf.mxu0
      %v1660 = vadd.f32 0.0, %v1659
      %v1661 = vpop.f32.mrf.mxu0
      %1662 = vmatprep.mubr.f32.mxu0 0.0
      %1663 = vmatmul.mubr.f32.gmra.mxu0 %v1591
      %v1664 = vpop.f32.mrf.mxu0
      %v1665 = vadd.f32 0.0, %v1664
      %v1666 = vpop.f32.mrf.mxu0
      %1667 = vdwg.mxu0
      %v1669 = vsel %vm1100, %v1098, 0
      %v1672 = vsel %vm1100, %v1099, 0
      %1674 = vmatprep.subr.mxu0 0.0
      %1675 = vmatpush1.msra.mxu0 0.0
      %1676 = vmatprep.subr.mxu0 0.0
      %1677 = vmatpush1.msra.mxu0 0.0
      %1678 = vmatprep.subr.mxu0 0.0
      %1679 = vmatpush1.msra.mxu0 0.0
      %1680 = vmatprep.subr.mxu0 0.0
      %1681 = vmatpush1.msra.mxu0 0.0
      %1682 = vmatprep.subr.mxu0 0.0
      %1683 = vmatpush1.msra.mxu0 0.0
      %1684 = vmatprep.subr.mxu0 0.0
      %1685 = vmatpush1.msra.mxu0 0.0
      %1686 = vmatprep.subr.mxu0 0.0
      %1687 = vmatpush1.msra.mxu0 0.0
      %1688 = vmatprep.subr.mxu0 0.0
      %1689 = vmatpush1.msra.mxu0 0.0
      %1690 = vmatprep.subr.mxu0 0.0
      %1691 = vmatpush1.msra.mxu0 0.0
      %1692 = vmatprep.subr.mxu0 0.0
      %1693 = vmatpush1.msra.mxu0 0.0
      %1694 = vmatprep.subr.mxu0 0.0
      %1695 = vmatpush1.msra.mxu0 0.0
      %1696 = vmatprep.subr.mxu0 0.0
      %1697 = vmatpush1.msra.mxu0 0.0
      %1698 = vmatprep.subr.mxu0 0.0
      %1699 = vmatpush1.msra.mxu0 0.0
      %1700 = vmatprep.subr.mxu0 0.0
      %1701 = vmatpush1.msra.mxu0 0.0
      %1702 = vmatprep.subr.mxu0 0.0
      %1703 = vmatpush1.msra.mxu0 %v687
      %1704 = vmatprep.subr.mxu0 0.0
      %1705 = vmatpush1.msra.mxu0 %v686
      %1706 = vmatprep.subr.mxu0 0.0
      %1707 = vmatpush2.msra.mxu0 0.0
      %1708 = vmatprep.subr.mxu0 0.0
      %1709 = vmatpush2.msra.mxu0 0.0
      %1710 = vmatprep.subr.mxu0 0.0
      %1711 = vmatpush2.msra.mxu0 0.0
      %1712 = vmatprep.subr.mxu0 0.0
      %1713 = vmatpush2.msra.mxu0 0.0
      %1714 = vmatprep.subr.mxu0 0.0
      %1715 = vmatpush2.msra.mxu0 0.0
      %1716 = vmatprep.subr.mxu0 0.0
      %1717 = vmatpush2.msra.mxu0 0.0
      %1718 = vmatprep.subr.mxu0 0.0
      %1719 = vmatpush2.msra.mxu0 0.0
      %1720 = vmatprep.subr.mxu0 0.0
      %1721 = vmatpush2.msra.mxu0 0.0
      %1722 = vmatprep.subr.mxu0 0.0
      %1723 = vmatpush2.msra.mxu0 0.0
      %1724 = vmatprep.subr.mxu0 0.0
      %1725 = vmatpush2.msra.mxu0 0.0
      %1726 = vmatprep.subr.mxu0 0.0
      %1727 = vmatpush2.msra.mxu0 0.0
      %1728 = vmatprep.subr.mxu0 0.0
      %1729 = vmatpush2.msra.mxu0 0.0
      %1730 = vmatprep.subr.mxu0 0.0
      %1731 = vmatpush2.msra.mxu0 0.0
      %1732 = vmatprep.subr.mxu0 0.0
      %1733 = vmatpush2.msra.mxu0 0.0
      %1734 = vmatprep.subr.mxu0 0.0
      %1735 = vmatpush2.msra.mxu0 0.0
      %1736 = vmatprep.subr.mxu0 0.0
      %1737 = vmatpush2.msra.mxu0 0.0
      %1738 = vmatprep.mubr.f32.mxu0 0.0
      %1739 = vmatmul.mubr.f32.gmra.mxu0 %v1669
      %v1740 = vpop.f32.mrf.mxu0
      %v1741 = vadd.f32 0.0, %v1740
      %v1742 = vpop.f32.mrf.mxu0
      %1743 = vmatprep.mubr.f32.mxu0 0.0
      %1744 = vmatmul.mubr.f32.gmra.mxu0 %v1672
      %v1745 = vpop.f32.mrf.mxu0
      %v1746 = vadd.f32 0.0, %v1745
      %v1747 = vpop.f32.mrf.mxu0
      %1748 = vdwg.mxu0
      %v1749 = vmul.f32 %v1174, %v1068
      %v1750 = vmul.f32 %v1179, %v1069
      %v1751 = vmul.f32 %v1255, %v1070
      %v1752 = vmul.f32 %v1260, %v1071
      %v1753 = vmul.f32 %v1336, %v1072
      %v1754 = vmul.f32 %v1341, %v1073
      %v1755 = vmul.f32 %v1417, %v1074
      %v1756 = vmul.f32 %v1422, %v1075
      %v1757 = vmul.f32 %v1498, %v1076
      %v1758 = vmul.f32 %v1503, %v1077
      %v1759 = vmul.f32 %v1579, %v1078
      %v1760 = vmul.f32 %v1584, %v1079
      %v1761 = vmul.f32 %v1660, %v1080
      %v1762 = vmul.f32 %v1665, %v1081
      %v1763 = vmul.f32 %v1741, %v1082
      %v1764 = vmul.f32 %v1746, %v1083
      %v1765 = vadd.f32 %v1749, %v1750
      %v1766 = vrot.slane %v1765, 4
      %v1767 = vadd.f32 %v1765, %v1766
      %v1768 = vrot.slane %v1767, 2
      %v1769 = vadd.f32 %v1767, %v1768
      %v1770 = vrot.slane %v1769, 1
      %v1771 = vadd.f32 %v1769, %v1770
      %v1772 = vadd.f32 %v1751, %v1752
      %v1773 = vrot.slane %v1772, 4
      %v1774 = vadd.f32 %v1772, %v1773
      %v1775 = vrot.slane %v1774, 2
      %v1776 = vadd.f32 %v1774, %v1775
      %v1777 = vrot.slane %v1776, 1
      %v1778 = vadd.f32 %v1776, %v1777
      %v1779 = vadd.f32 %v1753, %v1754
      %v1780 = vrot.slane %v1779, 4
      %v1781 = vadd.f32 %v1779, %v1780
      %v1782 = vrot.slane %v1781, 2
      %v1783 = vadd.f32 %v1781, %v1782
      %v1784 = vrot.slane %v1783, 1
      %v1785 = vadd.f32 %v1783, %v1784
      %v1786 = vadd.f32 %v1755, %v1756
      %v1787 = vrot.slane %v1786, 4
      %v1788 = vadd.f32 %v1786, %v1787
      %v1789 = vrot.slane %v1788, 2
      %v1790 = vadd.f32 %v1788, %v1789
      %v1791 = vrot.slane %v1790, 1
      %v1792 = vadd.f32 %v1790, %v1791
      %v1793 = vadd.f32 %v1757, %v1758
      %v1794 = vrot.slane %v1793, 4
      %v1795 = vadd.f32 %v1793, %v1794
      %v1796 = vrot.slane %v1795, 2
      %v1797 = vadd.f32 %v1795, %v1796
      %v1798 = vrot.slane %v1797, 1
      %v1799 = vadd.f32 %v1797, %v1798
      %v1800 = vadd.f32 %v1759, %v1760
      %v1801 = vrot.slane %v1800, 4
      %v1802 = vadd.f32 %v1800, %v1801
      %v1803 = vrot.slane %v1802, 2
      %v1804 = vadd.f32 %v1802, %v1803
      %v1805 = vrot.slane %v1804, 1
      %v1806 = vadd.f32 %v1804, %v1805
      %v1807 = vadd.f32 %v1761, %v1762
      %v1808 = vrot.slane %v1807, 4
      %v1809 = vadd.f32 %v1807, %v1808
      %v1810 = vrot.slane %v1809, 2
      %v1811 = vadd.f32 %v1809, %v1810
      %v1812 = vrot.slane %v1811, 1
      %v1813 = vadd.f32 %v1811, %v1812
      %v1814 = vadd.f32 %v1763, %v1764
      %v1815 = vrot.slane %v1814, 4
      %v1816 = vadd.f32 %v1814, %v1815
      %v1817 = vrot.slane %v1816, 2
      %v1818 = vadd.f32 %v1816, %v1817
      %v1819 = vrot.slane %v1818, 1
      %v1820 = vadd.f32 %v1818, %v1819
      %vm1829 = vcmask 1041409
      %v1830 = vsel %vm1829, %v1778, %v1771
      %vm1831 = vcmask 1042434
      %v1832 = vsel %vm1831, %v1785, %v1830
      %vm1833 = vcmask 1043459
      %v1834 = vsel %vm1833, %v1792, %v1832
      %vm1835 = vcmask 1044484
      %v1836 = vsel %vm1835, %v1799, %v1834
      %vm1837 = vcmask 1045509
      %v1838 = vsel %vm1837, %v1806, %v1836
      %vm1839 = vcmask 1046534
      %v1840 = vsel %vm1839, %v1813, %v1838
      %vm1841 = vcmask 1047559
      %v1842 = vsel %vm1841, %v1820, %v1840
      %1844 = vst [vmem:[%s257] sm:$0xff] %v1842
      %p1845 = scmp.lt.s32.totalorder %s18, 0
      %s1846 = scalar_select %p1845, %s18, 0
      %p1847 = scmp.lt.s32.totalorder %s19, 1
      %s1848 = scalar_select %p1847, %s19, 1
      %s1849 = smul.addr %s1846, 2
      %s1850 = sadd.s32 %s1848, %s1849
      %s1851 = smul.addr %s1850, 8
      %s1852 = scalar_lea.vmem %s3, %s1851
      // Predicated region
      $region33: #{_spatial_transformer_impl.1} parent=31 // pred_check
        %p1853 = pneg %p128
      $region34: #{_spatial_transformer_impl.1} parent=31 // pred_check_branch
        %1855 = sbr.rel (%p1853) target = $region36
      $region35: #{_spatial_transformer_impl.1} parent=31 // pred_region
        _
      $region36: #{_spatial_transformer_impl.1} parent=31 // pred_fallthru
        _
    $region32: #{_spatial_transformer_impl.1} parent=5 // pred_fallthru
      _
    %p1856 = scmp.le.s32.totalorder 2, %s9
    // Predicated region
    $region37: #{_spatial_transformer_impl.1} parent=5 // pred_check
      %p1857 = pneg %p1856
    $region38: #{_spatial_transformer_impl.1} parent=5 // pred_check_branch
      %1859 = sbr.rel (%p1857) target = $region40
    $region39: #{_spatial_transformer_impl.1} parent=5 // pred_region
      %s1860 = ssub.s32 %s9, 2
      // Predicated region
      $region41: #{_spatial_transformer_impl.1} parent=39 // pred_check
        %p1861 = pneg %p134
      $region42: #{_spatial_transformer_impl.1} parent=39 // pred_check_branch
        %1863 = sbr.rel (%p1861) target = $region44
      $region43: #{_spatial_transformer_impl.1} parent=39 // pred_region
        %p1864 = scmp.lt.s32.totalorder %s20, 0
        %s1865 = scalar_select %p1864, %s20, 0
        %p1866 = scmp.lt.s32.totalorder %s21, 1
        %s1867 = scalar_select %p1866, %s21, 1
        %s1868 = smul.addr %s1865, 2
        %s1869 = sadd.s32 %s1867, %s1868
        %s1870 = smul.addr %s1869, 8
        %s1871 = scalar_lea.vmem %s3, %s1870
      $region44: #{_spatial_transformer_impl.1} parent=39 // pred_fallthru
        _
    $region40: #{_spatial_transformer_impl.1} parent=5 // pred_fallthru
      _
  $region6: #{_spatial_transformer_impl.1} parent=0 // loop_footer
    %s13 = sadd.s32 1, %s9
  $region7: #{_spatial_transformer_impl.1} parent=0 // loop_footer_branch
    %8 = sbr.rel target = $region3
  $region8: #{_spatial_transformer_impl.1} parent=0 // loop_exit
    _

</llo_original>
